<compile_context>
chip_gen: v7x
topology: tpu7x:2x2x1
jax: 0.10.0
libtpu: 0.0.40
codegen_flags: <defaults>
</compile_context>

<pallas_src>
import jax
import jax.numpy as jnp
from jax.experimental import pallas as pl
from jax.experimental.pallas import tpu as pltpu

NUM_HEADS = 4
HEAD_DIM = 32
HIDDEN = NUM_HEADS * HEAD_DIM          # 128
SCALE = HEAD_DIM ** (-0.5)
GN_EPS = 1e-5


def _pick_samples_per_block(batch):
    """How many samples to stack per grid step (sublane-axis stacking)."""
    kind = ""
    try:
        kind = jax.devices()[0].device_kind.lower()
    except Exception:
        pass
    if "v5" in kind:
        # 128x128 MXU: one sample (128 rows / K=128) already saturates it, and
        # v5e's tighter scoped-VMEM default prefers the smaller tiles.
        return 1
    spb = 2 if batch % 2 == 0 else 1
    if "v7" in kind and batch // spb < 2:
        # Keep >= 2 "parallel" grid steps so both v7x TensorCores get work.
        return 1
    return spb


def _stack_qkv_weight(w_qkv, spb, c):
    """(3*HIDDEN, C) -> (3*spb*HIDDEN, spb*C): rows grouped [q | k | v], and
    sample-block-diagonal inside each group."""
    if spb == 1:
        return w_qkv
    parts = (w_qkv[0:HIDDEN], w_qkv[HIDDEN:2 * HIDDEN], w_qkv[2 * HIDDEN:])
    big = jnp.zeros((3 * spb * HIDDEN, spb * c), w_qkv.dtype)
    for p, wp in enumerate(parts):
        for s in range(spb):
            r0 = p * spb * HIDDEN + s * HIDDEN
            big = big.at[r0:r0 + HIDDEN, s * c:(s + 1) * c].set(wp)
    return big


def _block_diag(w, spb):
    if spb == 1:
        return w
    o, i = w.shape
    big = jnp.zeros((spb * o, spb * i), w.dtype)
    for s in range(spb):
        big = big.at[s * o:(s + 1) * o, s * i:(s + 1) * i].set(w)
    return big


def linear_attention(x_nchw, w_qkv, w_out, b_out, gn_w, gn_b,
                     samples_per_block=None):
    b, c, h, w = x_nchw.shape
    n = h * w
    spb = (samples_per_block if samples_per_block is not None
           else _pick_samples_per_block(b))
    if b % spb != 0:
        spb = 1
    d_stk = spb * HIDDEN                           # stacked attention rows

    # Free reshape of contiguous NCHW: (B, C, H, W) -> (B/spb, spb*C, N).
    x3 = x_nchw.reshape(b // spb, spb * c, n)

    # Host-side constant prep (tiny): stacked / block-diagonal weights and the
    # (sample x head) block-diagonal context mask, hoisted out of the kernel.
    wqkv_s = _stack_qkv_weight(w_qkv, spb, c)      # (3*d_stk, spb*c)
    wout_s = _block_diag(w_out, spb)               # (spb*c, d_stk)
    bout_s = jnp.tile(b_out, (spb, 1))             # (spb*c, 1)
    blk = jnp.arange(d_stk, dtype=jnp.int32) // HEAD_DIM
    mask = (blk[:, None] == blk[None, :]).astype(jnp.float32)   # (d_stk, d_stk)

    def kernel(x_ref, wqkv_ref, wout_ref, bout_ref, gnw_ref, gnb_ref,
               mask_ref, o_ref):
        x = x_ref[0]                                             # (spb*C, N)

        # to_qkv 1x1 conv == (block-diagonal) channel matmul; tiny K, keep f32
        # so the values feeding the softmaxes are full precision.
        qkv = jnp.dot(wqkv_ref[...], x,
                      preferred_element_type=jnp.float32)        # (3*d_stk, N)
        q_all = qkv[0:d_stk]
        k_all = qkv[d_stk:2 * d_stk]
        v_all = qkv[2 * d_stk:3 * d_stk]

        # q: softmax over head_dim (sublane groups of 32 rows -> tile-aligned,
        # free view).  f32 stats; SCALE folded into the EUP approx reciprocal.
        q3 = q_all.reshape(spb * NUM_HEADS, HEAD_DIM, n)
        qe = jnp.exp(q3 - jnp.max(q3, axis=1, keepdims=True))
        qs = jnp.sum(qe, axis=1, keepdims=True)
        q_n = (qe * (pl.reciprocal(qs, approx=True) * SCALE)).reshape(d_stk, n)

        # k: softmax over N.  Only the stabilised exp is materialised at
        # (D, N); the 1/sum normalisation is folded into the (D, D) context.
        ke = jnp.exp(k_all - jnp.max(k_all, axis=1, keepdims=True))  # f32

        # Column sums of ke in lane orientation via a tiny ones-row matmul
        # (same contraction pattern as ctx_raw below): no (D,1)->(1,D)
        # relayout and the reduction stays off the XLU.
        ones_row = jnp.ones((8, n), jnp.float32)
        ks_row = jax.lax.dot_general(ones_row, ke, (((1,), (1,)), ((), ())),
                                     preferred_element_type=jnp.float32)
        inv_ks = pl.reciprocal(ks_row[0:1, :], approx=True)      # (1, d_stk)

        # Fused context: one (D,N) x (D,N)^T MXU matmul, bf16 operands with
        # f32 accumulation (lane-axis contraction on both operands — same
        # natively supported form as flash-attention's q @ k^T).
        ctx_raw = jax.lax.dot_general(
            v_all.astype(jnp.bfloat16), ke.astype(jnp.bfloat16),
            (((1,), (1,)), ((), ())),
            preferred_element_type=jnp.float32)                  # (D, D)
        # Head/sample block-diagonal mask + k denominator as one small scale.
        ctx = ctx_raw * (mask_ref[...] * inv_ks)

        # out[(s,h,e),n] = sum_d ctx[(s,h,e),(s,h,d)] * q[(s,h,d),n]:
        # one full-width MXU matmul, bf16 operands, f32 accumulation.
        out = jnp.dot(ctx.astype(jnp.bfloat16), q_n.astype(jnp.bfloat16),
                      preferred_element_type=jnp.float32)        # (D, N)

        # to_out[0]: 1x1 conv with bias (block-diagonal over stacked samples);
        # M = spb*C is tiny, keep f32.
        y = jnp.dot(wout_ref[...], out,
                    preferred_element_type=jnp.float32) + bout_ref[...]

        # to_out[1]: GroupNorm(num_groups=1) == per-sample LayerNorm over
        # (C, N).  Centered two-pass variance; static loop over the (<=2)
        # stacked samples with direct sub-slice stores.
        inv_cnt = 1.0 / (c * n)
        for s in range(spb):
            ys = y[s * c:(s + 1) * c, :]
            mu = jnp.sum(ys) * inv_cnt
            diff = ys - mu
            var = jnp.sum(diff * diff) * inv_cnt
            g = gnw_ref[...] * jax.lax.rsqrt(var + GN_EPS)       # (C, 1)
            o_ref[0, s * c:(s + 1) * c, :] = diff * g + gnb_ref[...]

    # TODO(synk): for production N (f32 intermediates grow as ~O(HIDDEN*N)),
    # switch to an N-tiled two-pass plan (stats pass for k-softmax/GroupNorm,
    # then normalise + ctx accumulation over N chunks) and set
    # pltpu.CompilerParams(vmem_limit_bytes=...); here the whole (spb*C, N)
    # block stays resident because those reductions are global over N.
    out = pl.pallas_call(
        kernel,
        out_shape=jax.ShapeDtypeStruct((b // spb, spb * c, n), jnp.float32),
        grid_spec=pltpu.PrefetchScalarGridSpec(
            num_scalar_prefetch=0,
            grid=(b // spb,),
            in_specs=[
                pl.BlockSpec((1, spb * c, n), lambda i: (i, 0, 0)),      # x
                pl.BlockSpec((3 * d_stk, spb * c), lambda i: (0, 0)),    # w_qkv
                pl.BlockSpec((spb * c, d_stk), lambda i: (0, 0)),        # w_out
                pl.BlockSpec((spb * c, 1), lambda i: (0, 0)),            # b_out
                pl.BlockSpec((c, 1), lambda i: (0, 0)),                  # gn w
                pl.BlockSpec((c, 1), lambda i: (0, 0)),                  # gn b
                pl.BlockSpec((d_stk, d_stk), lambda i: (0, 0)),          # mask
            ],
            out_specs=pl.BlockSpec((1, spb * c, n), lambda i: (i, 0, 0)),
        ),
        compiler_params=pltpu.CompilerParams(
            dimension_semantics=("parallel",)),
    )(x3, wqkv_s, wout_s, bout_s, gn_w, gn_b, mask)

    return out.reshape(b, c, h, w)                 # free: (B/spb, spb*C, N) -> NCHW


def reference(x_nchw, w_qkv, w_out, b_out, gn_w, gn_b):
    """Pure-JAX reference mirroring the PyTorch forward."""
    b, c, h, w = x_nchw.shape
    n = h * w
    x = x_nchw.reshape(b, c, n)                                     # (b, c, n)
    qkv = jnp.einsum('oc,bcn->bon', w_qkv, x)                       # (b, 3*HIDDEN, n)
    q, k, v = jnp.split(qkv, 3, axis=1)

    def split_heads(t):  # (b, H*D, n) -> (b, heads, D, n)
        return t.reshape(b, NUM_HEADS, HEAD_DIM, n)

    q, k, v = map(split_heads, (q, k, v))
    q = jax.nn.softmax(q, axis=-2) * SCALE
    k = jax.nn.softmax(k, axis=-1)
    context = jnp.einsum('bhdn,bhen->bhde', k, v)
    out = jnp.einsum('bhde,bhdn->bhen', context, q)                 # (b, heads, D, n)
    out = out.reshape(b, HIDDEN, n)
    y = jnp.einsum('ck,bkn->bcn', w_out, out) + b_out[None]         # (b, c, n)
    mean = jnp.mean(y, axis=(1, 2), keepdims=True)
    var = jnp.mean((y - mean) ** 2, axis=(1, 2), keepdims=True)
    y = (y - mean) * jax.lax.rsqrt(var + GN_EPS) * gn_w[None] + gn_b[None]
    return y.reshape(b, c, h, w)


if __name__ == "__main__":
    B, C, H, W = 2, 4, 16, 16

    key = jax.random.PRNGKey(0)
    kx, kqkv, kout, kbias = jax.random.split(key, 4)

    x = jax.random.normal(kx, (B, C, H, W), dtype=jnp.float32)

    # Conv 1x1 weights stored in (out_channels, in_channels) matmul form.
    w_qkv = jax.random.normal(kqkv, (3 * HIDDEN, C), dtype=jnp.float32) * 0.05
    w_out = jax.random.normal(kout, (C, HIDDEN), dtype=jnp.float32) * 0.05
    b_out = jax.random.normal(kbias, (C, 1), dtype=jnp.float32) * 0.05
    gn_w = jnp.ones((C, 1), dtype=jnp.float32)
    gn_b = jnp.zeros((C, 1), dtype=jnp.float32)

    out = jax.block_until_ready(
        linear_attention(x, w_qkv, w_out, b_out, gn_w, gn_b))

    ref = jax.block_until_ready(
        reference(x, w_qkv, w_out, b_out, gn_w, gn_b))

    assert out.shape == (B, C, H, W), out.shape
    err = float(jnp.max(jnp.abs(out - ref)))
    # Tolerance sized for bf16 MXU operands (f32 accumulation) plus the EUP
    # approximate reciprocals in the two softmax denominators.
    assert err < 2e-2, err

    print("KERNEL_OK")
</pallas_src>

<mosaic_0001>
module attributes {stable_mosaic.version = 11 : i64} {
  func.func @kernel(%arg0: i32, %arg1: memref<1x8x256xf32, #tpu.memory_space<vmem>>, %arg2: memref<768x8xf32, #tpu.memory_space<vmem>>, %arg3: memref<8x256xf32, #tpu.memory_space<vmem>>, %arg4: memref<8x1xf32, #tpu.memory_space<vmem>>, %arg5: memref<4x1xf32, #tpu.memory_space<vmem>>, %arg6: memref<4x1xf32, #tpu.memory_space<vmem>>, %arg7: memref<256x256xf32, #tpu.memory_space<vmem>>, %arg8: memref<1x8x256xf32, #tpu.memory_space<vmem>>) attributes {dimension_semantics = [#tpu.dimension_semantics<parallel>], iteration_bounds = array<i64: 1>, scalar_prefetch = 0 : i64, scratch_operands = 0 : i64, tpu.core_type = #tpu.core_type<tc>, window_params = [{transform_indices = @transform_0, window_bounds = array<i64: 1, 8, 256>}, {pipeline_mode = #tpu.pipeline_mode<synchronous>, transform_indices = @transform_1, window_bounds = array<i64: 768, 8>}, {pipeline_mode = #tpu.pipeline_mode<synchronous>, transform_indices = @transform_2, window_bounds = array<i64: 8, 256>}, {pipeline_mode = #tpu.pipeline_mode<synchronous>, transform_indices = @transform_3, window_bounds = array<i64: 8, 1>}, {pipeline_mode = #tpu.pipeline_mode<synchronous>, transform_indices = @transform_4, window_bounds = array<i64: 4, 1>}, {pipeline_mode = #tpu.pipeline_mode<synchronous>, transform_indices = @transform_5, window_bounds = array<i64: 4, 1>}, {pipeline_mode = #tpu.pipeline_mode<synchronous>, transform_indices = @transform_6, window_bounds = array<i64: 256, 256>}, {transform_indices = @transform_7, window_bounds = array<i64: 1, 8, 256>}]} {
    %c0 = arith.constant 0 : index
    %c0_0 = arith.constant 0 : index
    %c0_1 = arith.constant 0 : index
    %0 = vector.load %arg1[%c0, %c0_0, %c0_1] : memref<1x8x256xf32, #tpu.memory_space<vmem>>, vector<1x8x256xf32>
    %1 = vector.shape_cast %0 : vector<1x8x256xf32> to vector<8x256xf32>
    %c0_2 = arith.constant 0 : index
    %c0_3 = arith.constant 0 : index
    %2 = vector.load %arg2[%c0_2, %c0_3] : memref<768x8xf32, #tpu.memory_space<vmem>>, vector<768x8xf32>
    %cst = arith.constant dense<0.000000e+00> : vector<768x256xf32>
    %3 = tpu.matmul %2, %1, %cst {dimension_numbers = #tpu.dot_dimension_numbers<[1], [0], [0], [1], [0, 0, 1, 1], [], []>} : vector<768x8xf32>, vector<8x256xf32>, vector<768x256xf32> -> vector<768x256xf32>
    %4 = vector.extract_strided_slice %3 {offsets = [0, 0], sizes = [256, 256], strides = [1, 1]} : vector<768x256xf32> to vector<256x256xf32>
    %5 = vector.extract_strided_slice %3 {offsets = [256, 0], sizes = [256, 256], strides = [1, 1]} : vector<768x256xf32> to vector<256x256xf32>
    %6 = vector.extract_strided_slice %3 {offsets = [512, 0], sizes = [256, 256], strides = [1, 1]} : vector<768x256xf32> to vector<256x256xf32>
    %7 = vector.shape_cast %4 : vector<256x256xf32> to vector<8x32x256xf32>
    %cst_4 = arith.constant dense<0xFF800000> : vector<8x256xf32>
    %8 = vector.multi_reduction <maximumf>, %7, %cst_4 [1] : vector<8x32x256xf32> to vector<8x256xf32>
    %9 = vector.shape_cast %8 : vector<8x256xf32> to vector<8x1x256xf32>
    %10 = vector.broadcast %9 : vector<8x1x256xf32> to vector<8x32x256xf32>
    %11 = arith.subf %7, %10 : vector<8x32x256xf32>
    %12 = math.exp %11 : vector<8x32x256xf32>
    %cst_5 = arith.constant dense<0.000000e+00> : vector<8x256xf32>
    %13 = vector.multi_reduction <add>, %12, %cst_5 [1] : vector<8x32x256xf32> to vector<8x256xf32>
    %14 = vector.shape_cast %13 : vector<8x256xf32> to vector<8x1x256xf32>
    %15 = tpu.reciprocal %14 {approx = true} : vector<8x1x256xf32> -> vector<8x1x256xf32>
    %cst_6 = arith.constant 0.176776692 : f32
    %16 = vector.broadcast %cst_6 : f32 to vector<8x1x256xf32>
    %17 = arith.mulf %15, %16 : vector<8x1x256xf32>
    %18 = vector.broadcast %17 : vector<8x1x256xf32> to vector<8x32x256xf32>
    %19 = arith.mulf %12, %18 : vector<8x32x256xf32>
    %20 = vector.shape_cast %19 : vector<8x32x256xf32> to vector<256x256xf32>
    %cst_7 = arith.constant dense<0xFF800000> : vector<256xf32>
    %21 = vector.multi_reduction <maximumf>, %5, %cst_7 [1] : vector<256x256xf32> to vector<256xf32>
    %22 = vector.shape_cast %21 : vector<256xf32> to vector<256x1xf32>
    %23 = vector.broadcast %22 : vector<256x1xf32> to vector<256x256xf32>
    %24 = arith.subf %5, %23 : vector<256x256xf32>
    %25 = math.exp %24 : vector<256x256xf32>
    %cst_8 = arith.constant 1.000000e+00 : f32
    %26 = vector.broadcast %cst_8 : f32 to vector<8x256xf32>
    %cst_9 = arith.constant dense<0.000000e+00> : vector<8x256xf32>
    %27 = tpu.matmul %26, %25, %cst_9 {dimension_numbers = #tpu.dot_dimension_numbers<[1], [1], [0], [0], [0, 0, 1, 0], [], []>} : vector<8x256xf32>, vector<256x256xf32>, vector<8x256xf32> -> vector<8x256xf32>
    %28 = vector.extract_strided_slice %27 {offsets = [0, 0], sizes = [1, 256], strides = [1, 1]} : vector<8x256xf32> to vector<1x256xf32>
    %29 = tpu.reciprocal %28 {approx = true} : vector<1x256xf32> -> vector<1x256xf32>
    %30 = arith.truncf %6 : vector<256x256xf32> to vector<256x256xbf16>
    %31 = arith.truncf %25 : vector<256x256xf32> to vector<256x256xbf16>
    %cst_10 = arith.constant dense<0.000000e+00> : vector<256x256xf32>
    %32 = tpu.matmul %30, %31, %cst_10 {dimension_numbers = #tpu.dot_dimension_numbers<[1], [1], [0], [0], [0, 0, 1, 0], [], []>} : vector<256x256xbf16>, vector<256x256xbf16>, vector<256x256xf32> -> vector<256x256xf32>
    %c0_11 = arith.constant 0 : index
    %c0_12 = arith.constant 0 : index
    %33 = vector.load %arg7[%c0_11, %c0_12] : memref<256x256xf32, #tpu.memory_space<vmem>>, vector<256x256xf32>
    %34 = vector.broadcast %29 : vector<1x256xf32> to vector<256x256xf32>
    %35 = arith.mulf %33, %34 : vector<256x256xf32>
    %36 = arith.mulf %32, %35 : vector<256x256xf32>
    %37 = arith.truncf %36 : vector<256x256xf32> to vector<256x256xbf16>
    %38 = arith.truncf %20 : vector<256x256xf32> to vector<256x256xbf16>
    %cst_13 = arith.constant dense<0.000000e+00> : vector<256x256xf32>
    %39 = tpu.matmul %37, %38, %cst_13 {dimension_numbers = #tpu.dot_dimension_numbers<[1], [0], [0], [1], [0, 0, 1, 1], [], []>} : vector<256x256xbf16>, vector<256x256xbf16>, vector<256x256xf32> -> vector<256x256xf32>
    %c0_14 = arith.constant 0 : index
    %c0_15 = arith.constant 0 : index
    %40 = vector.load %arg3[%c0_14, %c0_15] : memref<8x256xf32, #tpu.memory_space<vmem>>, vector<8x256xf32>
    %cst_16 = arith.constant dense<0.000000e+00> : vector<8x256xf32>
    %41 = tpu.matmul %40, %39, %cst_16 {dimension_numbers = #tpu.dot_dimension_numbers<[1], [0], [0], [1], [0, 0, 1, 1], [], []>} : vector<8x256xf32>, vector<256x256xf32>, vector<8x256xf32> -> vector<8x256xf32>
    %c0_17 = arith.constant 0 : index
    %c0_18 = arith.constant 0 : index
    %42 = vector.load %arg4[%c0_17, %c0_18] : memref<8x1xf32, #tpu.memory_space<vmem>>, vector<8x1xf32>
    %43 = vector.broadcast %42 : vector<8x1xf32> to vector<8x256xf32>
    %44 = arith.addf %41, %43 : vector<8x256xf32>
    %45 = vector.extract_strided_slice %44 {offsets = [0, 0], sizes = [4, 256], strides = [1, 1]} : vector<8x256xf32> to vector<4x256xf32>
    %46 = vector.shape_cast %45 : vector<4x256xf32> to vector<1x4x256xf32>
    %cst_19 = arith.constant dense<0.000000e+00> : vector<1xf32>
    %47 = vector.multi_reduction <add>, %46, %cst_19 [1, 2] : vector<1x4x256xf32> to vector<1xf32>
    %48 = vector.shape_cast %47 : vector<1xf32> to vector<1x1x1xf32>
    %49 = vector.extract %48[0, 0, 0] : f32 from vector<1x1x1xf32>
    %cst_20 = arith.constant 9.765625E-4 : f32
    %50 = arith.mulf %49, %cst_20 : f32
    %51 = vector.broadcast %50 : f32 to vector<4x256xf32>
    %52 = arith.subf %45, %51 : vector<4x256xf32>
    %53 = arith.mulf %52, %52 : vector<4x256xf32>
    %54 = vector.shape_cast %53 : vector<4x256xf32> to vector<1x4x256xf32>
    %cst_21 = arith.constant dense<0.000000e+00> : vector<1xf32>
    %55 = vector.multi_reduction <add>, %54, %cst_21 [1, 2] : vector<1x4x256xf32> to vector<1xf32>
    %56 = vector.shape_cast %55 : vector<1xf32> to vector<1x1x1xf32>
    %57 = vector.extract %56[0, 0, 0] : f32 from vector<1x1x1xf32>
    %cst_22 = arith.constant 9.765625E-4 : f32
    %58 = arith.mulf %57, %cst_22 : f32
    %c0_23 = arith.constant 0 : index
    %c0_24 = arith.constant 0 : index
    %59 = vector.load %arg5[%c0_23, %c0_24] : memref<4x1xf32, #tpu.memory_space<vmem>>, vector<4x1xf32>
    %cst_25 = arith.constant 9.99999974E-6 : f32
    %60 = arith.addf %58, %cst_25 : f32
    %61 = math.rsqrt %60 : f32
    %62 = vector.broadcast %61 : f32 to vector<4x1xf32>
    %63 = arith.mulf %59, %62 : vector<4x1xf32>
    %64 = vector.broadcast %63 : vector<4x1xf32> to vector<4x256xf32>
    %65 = arith.mulf %52, %64 : vector<4x256xf32>
    %c0_26 = arith.constant 0 : index
    %c0_27 = arith.constant 0 : index
    %66 = vector.load %arg6[%c0_26, %c0_27] : memref<4x1xf32, #tpu.memory_space<vmem>>, vector<4x1xf32>
    %67 = vector.broadcast %66 : vector<4x1xf32> to vector<4x256xf32>
    %68 = arith.addf %65, %67 : vector<4x256xf32>
    %c0_28 = arith.constant 0 : index
    %c0_29 = arith.constant 0 : index
    %c0_30 = arith.constant 0 : index
    %69 = vector.load %arg8[%c0_28, %c0_29, %c0_30] : memref<1x8x256xf32, #tpu.memory_space<vmem>>, vector<1x4x256xf32>
    %70 = vector.shape_cast %69 : vector<1x4x256xf32> to vector<4x256xf32>
    %71 = vector.shape_cast %68 : vector<4x256xf32> to vector<1x4x256xf32>
    tpu.vector_store %arg8[%c0_28, %c0_29, %c0_30], %71 {strides = array<i32>} : memref<1x8x256xf32, #tpu.memory_space<vmem>>, vector<1x4x256xf32>,
    %72 = vector.extract_strided_slice %44 {offsets = [4, 0], sizes = [4, 256], strides = [1, 1]} : vector<8x256xf32> to vector<4x256xf32>
    %73 = vector.shape_cast %72 : vector<4x256xf32> to vector<1x4x256xf32>
    %cst_31 = arith.constant dense<0.000000e+00> : vector<1xf32>
    %74 = vector.multi_reduction <add>, %73, %cst_31 [1, 2] : vector<1x4x256xf32> to vector<1xf32>
    %75 = vector.shape_cast %74 : vector<1xf32> to vector<1x1x1xf32>
    %76 = vector.extract %75[0, 0, 0] : f32 from vector<1x1x1xf32>
    %cst_32 = arith.constant 9.765625E-4 : f32
    %77 = arith.mulf %76, %cst_32 : f32
    %78 = vector.broadcast %77 : f32 to vector<4x256xf32>
    %79 = arith.subf %72, %78 : vector<4x256xf32>
    %80 = arith.mulf %79, %79 : vector<4x256xf32>
    %81 = vector.shape_cast %80 : vector<4x256xf32> to vector<1x4x256xf32>
    %cst_33 = arith.constant dense<0.000000e+00> : vector<1xf32>
    %82 = vector.multi_reduction <add>, %81, %cst_33 [1, 2] : vector<1x4x256xf32> to vector<1xf32>
    %83 = vector.shape_cast %82 : vector<1xf32> to vector<1x1x1xf32>
    %84 = vector.extract %83[0, 0, 0] : f32 from vector<1x1x1xf32>
    %cst_34 = arith.constant 9.765625E-4 : f32
    %85 = arith.mulf %84, %cst_34 : f32
    %c0_35 = arith.constant 0 : index
    %c0_36 = arith.constant 0 : index
    %86 = vector.load %arg5[%c0_35, %c0_36] : memref<4x1xf32, #tpu.memory_space<vmem>>, vector<4x1xf32>
    %cst_37 = arith.constant 9.99999974E-6 : f32
    %87 = arith.addf %85, %cst_37 : f32
    %88 = math.rsqrt %87 : f32
    %89 = vector.broadcast %88 : f32 to vector<4x1xf32>
    %90 = arith.mulf %86, %89 : vector<4x1xf32>
    %91 = vector.broadcast %90 : vector<4x1xf32> to vector<4x256xf32>
    %92 = arith.mulf %79, %91 : vector<4x256xf32>
    %c0_38 = arith.constant 0 : index
    %c0_39 = arith.constant 0 : index
    %93 = vector.load %arg6[%c0_38, %c0_39] : memref<4x1xf32, #tpu.memory_space<vmem>>, vector<4x1xf32>
    %94 = vector.broadcast %93 : vector<4x1xf32> to vector<4x256xf32>
    %95 = arith.addf %92, %94 : vector<4x256xf32>
    %c0_40 = arith.constant 0 : index
    %c4 = arith.constant 4 : index
    %c0_41 = arith.constant 0 : index
    %96 = vector.load %arg8[%c0_40, %c4, %c0_41] : memref<1x8x256xf32, #tpu.memory_space<vmem>>, vector<1x4x256xf32>
    %97 = vector.shape_cast %96 : vector<1x4x256xf32> to vector<4x256xf32>
    %98 = vector.shape_cast %95 : vector<4x256xf32> to vector<1x4x256xf32>
    tpu.vector_store %arg8[%c0_40, %c4, %c0_41], %98 {strides = array<i32>} : memref<1x8x256xf32, #tpu.memory_space<vmem>>, vector<1x4x256xf32>,
    return
  }
  func.func @transform_0(%arg0: i32) -> (i32, i32, i32) {
    %c0_i32 = arith.constant 0 : i32
    %c0_i32_0 = arith.constant 0 : i32
    %c0_i32_1 = arith.constant 0 : i32
    return %arg0, %c0_i32, %c0_i32_0 : i32, i32, i32
  }
  func.func @transform_1(%arg0: i32) -> (i32, i32) {
    %c0_i32 = arith.constant 0 : i32
    %c0_i32_0 = arith.constant 0 : i32
    %c0_i32_1 = arith.constant 0 : i32
    return %c0_i32, %c0_i32_0 : i32, i32
  }
  func.func @transform_2(%arg0: i32) -> (i32, i32) {
    %c0_i32 = arith.constant 0 : i32
    %c0_i32_0 = arith.constant 0 : i32
    %c0_i32_1 = arith.constant 0 : i32
    return %c0_i32, %c0_i32_0 : i32, i32
  }
  func.func @transform_3(%arg0: i32) -> (i32, i32) {
    %c0_i32 = arith.constant 0 : i32
    %c0_i32_0 = arith.constant 0 : i32
    %c0_i32_1 = arith.constant 0 : i32
    return %c0_i32, %c0_i32_0 : i32, i32
  }
  func.func @transform_4(%arg0: i32) -> (i32, i32) {
    %c0_i32 = arith.constant 0 : i32
    %c0_i32_0 = arith.constant 0 : i32
    %c0_i32_1 = arith.constant 0 : i32
    return %c0_i32, %c0_i32_0 : i32, i32
  }
  func.func @transform_5(%arg0: i32) -> (i32, i32) {
    %c0_i32 = arith.constant 0 : i32
    %c0_i32_0 = arith.constant 0 : i32
    %c0_i32_1 = arith.constant 0 : i32
    return %c0_i32, %c0_i32_0 : i32, i32
  }
  func.func @transform_6(%arg0: i32) -> (i32, i32) {
    %c0_i32 = arith.constant 0 : i32
    %c0_i32_0 = arith.constant 0 : i32
    %c0_i32_1 = arith.constant 0 : i32
    return %c0_i32, %c0_i32_0 : i32, i32
  }
  func.func @transform_7(%arg0: i32) -> (i32, i32, i32) {
    %c0_i32 = arith.constant 0 : i32
    %c0_i32_0 = arith.constant 0 : i32
    %c0_i32_1 = arith.constant 0 : i32
    return %arg0, %c0_i32, %c0_i32_0 : i32, i32, i32
  }
}

</mosaic_0001>

<llo_original>
// kernel: tpu_custom_call.1
$region0: #{tpu_custom_call.1}
  #allocation0 [shape = 'u32[]', space=smem, size = 0x4, offset = 0x4, fixed_abs, tag = 'smem constant byte address 0x4 - core index']
  #allocation1 [shape = 'u32[144,128]{1,0:T(1,128)}', space=vmem, size = 0x12000, scoped, tag = 'internal scratch']
  %s0 = inlined_call_operand.vmem [shape: f32[1,8,256], index: 0, kind: input, shape index: {}]
  %s1 = inlined_call_operand.vmem [shape: f32[768,8], index: 1, kind: input, shape index: {}]
  %s2 = inlined_call_operand.vmem [shape: f32[8,256], index: 2, kind: input, shape index: {}]
  %s3 = inlined_call_operand.vmem [shape: f32[8,1], index: 3, kind: input, shape index: {}]
  %s4 = inlined_call_operand.vmem [shape: f32[4,1], index: 4, kind: input, shape index: {}]
  %s5 = inlined_call_operand.vmem [shape: f32[4,1], index: 5, kind: input, shape index: {}]
  %s6 = inlined_call_operand.vmem [shape: f32[256,256], index: 6, kind: input, shape index: {}]
  %s7 = inlined_call_operand.hbm [shape: f32[1,8,256], index: 7, kind: output, shape index: {}]
  %s8 = sld [smem:[#allocation0]]
  $region38: #{tpu_custom_call.1} parent=0
    _
  %s10 = ssub.s32 1, %s8
  %s11 = scalar_select 0, %s10, %s8
  $region1: #{tpu_custom_call.1} parent=0
    #allocation2 [shape = 'u8[8192]{0}', space=vmem, size = 0x2000, scoped, tag = 'output window, operand 0, single buffered']
    #allocation3 [shape = 's32[1]{0}', space=sflag, size = 0x4, scoped, tag = 'scoped memory for tpu_custom_call.1']
    %12 = vsyncpa [#allocation3], 0
    // Predicated region
    $region2: #{tpu_custom_call.1} parent=1 // pred_check
      _
    $region3: #{tpu_custom_call.1} parent=1 // pred_check_branch
      %14 = sbr.rel (0) target = $region5
    $region4: #{tpu_custom_call.1} parent=1 // pred_region
      _
    $region5: #{tpu_custom_call.1} parent=1 // pred_fallthru
      _
    // Predicated region
    $region6: #{tpu_custom_call.1} parent=1 // pred_check
      _
    $region7: #{tpu_custom_call.1} parent=1 // pred_check_branch
      %16 = sbr.rel (0) target = $region9
    $region8: #{tpu_custom_call.1} parent=1 // pred_region
      _
    $region9: #{tpu_custom_call.1} parent=1 // pred_fallthru
      _
    // Predicated region
    $region10: #{tpu_custom_call.1} parent=1 // pred_check
      _
    $region11: #{tpu_custom_call.1} parent=1 // pred_check_branch
      %18 = sbr.rel (0) target = $region13
    $region12: #{tpu_custom_call.1} parent=1 // pred_region
      _
    $region13: #{tpu_custom_call.1} parent=1 // pred_fallthru
      _
    // Predicated region
    $region14: #{tpu_custom_call.1} parent=1 // pred_check
      _
    $region15: #{tpu_custom_call.1} parent=1 // pred_check_branch
      %20 = sbr.rel (0) target = $region17
    $region16: #{tpu_custom_call.1} parent=1 // pred_region
      _
    $region17: #{tpu_custom_call.1} parent=1 // pred_fallthru
      _
    // Predicated region
    $region18: #{tpu_custom_call.1} parent=1 // pred_check
      _
    $region19: #{tpu_custom_call.1} parent=1 // pred_check_branch
      %22 = sbr.rel (0) target = $region21
    $region20: #{tpu_custom_call.1} parent=1 // pred_region
      _
    $region21: #{tpu_custom_call.1} parent=1 // pred_fallthru
      _
    // Predicated region
    $region22: #{tpu_custom_call.1} parent=1 // pred_check
      _
    $region23: #{tpu_custom_call.1} parent=1 // pred_check_branch
      %24 = sbr.rel (0) target = $region25
    $region24: #{tpu_custom_call.1} parent=1 // pred_region
      _
    $region25: #{tpu_custom_call.1} parent=1 // pred_fallthru
      _
    // Predicated region
    $region26: #{tpu_custom_call.1} parent=1 // pred_check
      _
    $region27: #{tpu_custom_call.1} parent=1 // pred_check_branch
      %26 = sbr.rel (0) target = $region29
    $region28: #{tpu_custom_call.1} parent=1 // pred_region
      _
    $region29: #{tpu_custom_call.1} parent=1 // pred_fallthru
      _
    %v27 = vld [vmem:[%s0] sm:$0xff]
    %v28 = vld [vmem:[%s0 + $0x8] sm:$0xff]
    %v29 = vld [vmem:[%s1] sm:$0xff]
    %v30 = vld [vmem:[%s1 + $0x8] sm:$0xff]
    %v31 = vld [vmem:[%s1 + $0x10] sm:$0xff]
    %v32 = vld [vmem:[%s1 + $0x18] sm:$0xff]
    %v33 = vld [vmem:[%s1 + $0x20] sm:$0xff]
    %v34 = vld [vmem:[%s1 + $0x28] sm:$0xff]
    %v35 = vld [vmem:[%s1 + $0x30] sm:$0xff]
    %v36 = vld [vmem:[%s1 + $0x38] sm:$0xff]
    %v37 = vld [vmem:[%s1 + $0x40] sm:$0xff]
    %v38 = vld [vmem:[%s1 + $0x48] sm:$0xff]
    %v39 = vld [vmem:[%s1 + $0x50] sm:$0xff]
    %v40 = vld [vmem:[%s1 + $0x58] sm:$0xff]
    %v41 = vld [vmem:[%s1 + $0x60] sm:$0xff]
    %v42 = vld [vmem:[%s1 + $0x68] sm:$0xff]
    %v43 = vld [vmem:[%s1 + $0x70] sm:$0xff]
    %v44 = vld [vmem:[%s1 + $0x78] sm:$0xff]
    %v45 = vld [vmem:[%s1 + $0x80] sm:$0xff]
    %v46 = vld [vmem:[%s1 + $0x88] sm:$0xff]
    %v47 = vld [vmem:[%s1 + $0x90] sm:$0xff]
    %v48 = vld [vmem:[%s1 + $0x98] sm:$0xff]
    %v49 = vld [vmem:[%s1 + $0xa0] sm:$0xff]
    %v50 = vld [vmem:[%s1 + $0xa8] sm:$0xff]
    %v51 = vld [vmem:[%s1 + $0xb0] sm:$0xff]
    %v52 = vld [vmem:[%s1 + $0xb8] sm:$0xff]
    %v53 = vld [vmem:[%s1 + $0xc0] sm:$0xff]
    %v54 = vld [vmem:[%s1 + $0xc8] sm:$0xff]
    %v55 = vld [vmem:[%s1 + $0xd0] sm:$0xff]
    %v56 = vld [vmem:[%s1 + $0xd8] sm:$0xff]
    %v57 = vld [vmem:[%s1 + $0xe0] sm:$0xff]
    %v58 = vld [vmem:[%s1 + $0xe8] sm:$0xff]
    %v59 = vld [vmem:[%s1 + $0xf0] sm:$0xff]
    %v60 = vld [vmem:[%s1 + $0xf8] sm:$0xff]
    %v61 = vld [vmem:[%s1 + $0x100] sm:$0xff]
    %v62 = vld [vmem:[%s1 + $0x108] sm:$0xff]
    %v63 = vld [vmem:[%s1 + $0x110] sm:$0xff]
    %v64 = vld [vmem:[%s1 + $0x118] sm:$0xff]
    %v65 = vld [vmem:[%s1 + $0x120] sm:$0xff]
    %v66 = vld [vmem:[%s1 + $0x128] sm:$0xff]
    %v67 = vld [vmem:[%s1 + $0x130] sm:$0xff]
    %v68 = vld [vmem:[%s1 + $0x138] sm:$0xff]
    %v69 = vld [vmem:[%s1 + $0x140] sm:$0xff]
    %v70 = vld [vmem:[%s1 + $0x148] sm:$0xff]
    %v71 = vld [vmem:[%s1 + $0x150] sm:$0xff]
    %v72 = vld [vmem:[%s1 + $0x158] sm:$0xff]
    %v73 = vld [vmem:[%s1 + $0x160] sm:$0xff]
    %v74 = vld [vmem:[%s1 + $0x168] sm:$0xff]
    %v75 = vld [vmem:[%s1 + $0x170] sm:$0xff]
    %v76 = vld [vmem:[%s1 + $0x178] sm:$0xff]
    %v77 = vld [vmem:[%s1 + $0x180] sm:$0xff]
    %v78 = vld [vmem:[%s1 + $0x188] sm:$0xff]
    %v79 = vld [vmem:[%s1 + $0x190] sm:$0xff]
    %v80 = vld [vmem:[%s1 + $0x198] sm:$0xff]
    %v81 = vld [vmem:[%s1 + $0x1a0] sm:$0xff]
    %v82 = vld [vmem:[%s1 + $0x1a8] sm:$0xff]
    %v83 = vld [vmem:[%s1 + $0x1b0] sm:$0xff]
    %v84 = vld [vmem:[%s1 + $0x1b8] sm:$0xff]
    %v85 = vld [vmem:[%s1 + $0x1c0] sm:$0xff]
    %v86 = vld [vmem:[%s1 + $0x1c8] sm:$0xff]
    %v87 = vld [vmem:[%s1 + $0x1d0] sm:$0xff]
    %v88 = vld [vmem:[%s1 + $0x1d8] sm:$0xff]
    %v89 = vld [vmem:[%s1 + $0x1e0] sm:$0xff]
    %v90 = vld [vmem:[%s1 + $0x1e8] sm:$0xff]
    %v91 = vld [vmem:[%s1 + $0x1f0] sm:$0xff]
    %v92 = vld [vmem:[%s1 + $0x1f8] sm:$0xff]
    %v93 = vld [vmem:[%s1 + $0x200] sm:$0xff]
    %v94 = vld [vmem:[%s1 + $0x208] sm:$0xff]
    %v95 = vld [vmem:[%s1 + $0x210] sm:$0xff]
    %v96 = vld [vmem:[%s1 + $0x218] sm:$0xff]
    %v97 = vld [vmem:[%s1 + $0x220] sm:$0xff]
    %v98 = vld [vmem:[%s1 + $0x228] sm:$0xff]
    %v99 = vld [vmem:[%s1 + $0x230] sm:$0xff]
    %v100 = vld [vmem:[%s1 + $0x238] sm:$0xff]
    %v101 = vld [vmem:[%s1 + $0x240] sm:$0xff]
    %v102 = vld [vmem:[%s1 + $0x248] sm:$0xff]
    %v103 = vld [vmem:[%s1 + $0x250] sm:$0xff]
    %v104 = vld [vmem:[%s1 + $0x258] sm:$0xff]
    %v105 = vld [vmem:[%s1 + $0x260] sm:$0xff]
    %v106 = vld [vmem:[%s1 + $0x268] sm:$0xff]
    %v107 = vld [vmem:[%s1 + $0x270] sm:$0xff]
    %v108 = vld [vmem:[%s1 + $0x278] sm:$0xff]
    %v109 = vld [vmem:[%s1 + $0x280] sm:$0xff]
    %v110 = vld [vmem:[%s1 + $0x288] sm:$0xff]
    %v111 = vld [vmem:[%s1 + $0x290] sm:$0xff]
    %v112 = vld [vmem:[%s1 + $0x298] sm:$0xff]
    %v113 = vld [vmem:[%s1 + $0x2a0] sm:$0xff]
    %v114 = vld [vmem:[%s1 + $0x2a8] sm:$0xff]
    %v115 = vld [vmem:[%s1 + $0x2b0] sm:$0xff]
    %v116 = vld [vmem:[%s1 + $0x2b8] sm:$0xff]
    %v117 = vld [vmem:[%s1 + $0x2c0] sm:$0xff]
    %v118 = vld [vmem:[%s1 + $0x2c8] sm:$0xff]
    %v119 = vld [vmem:[%s1 + $0x2d0] sm:$0xff]
    %v120 = vld [vmem:[%s1 + $0x2d8] sm:$0xff]
    %v121 = vld [vmem:[%s1 + $0x2e0] sm:$0xff]
    %v122 = vld [vmem:[%s1 + $0x2e8] sm:$0xff]
    %v123 = vld [vmem:[%s1 + $0x2f0] sm:$0xff]
    %v124 = vld [vmem:[%s1 + $0x2f8] sm:$0xff]
    %vm125 = vcmask 64512
    %v127 = vsel %vm125, %v29, 0
    %v130 = vsel %vm125, %v30, 0
    %v133 = vsel %vm125, %v31, 0
    %v136 = vsel %vm125, %v32, 0
    %v139 = vsel %vm125, %v33, 0
    %v142 = vsel %vm125, %v34, 0
    %v145 = vsel %vm125, %v35, 0
    %v148 = vsel %vm125, %v36, 0
    %v151 = vsel %vm125, %v37, 0
    %v154 = vsel %vm125, %v38, 0
    %v157 = vsel %vm125, %v39, 0
    %v160 = vsel %vm125, %v40, 0
    %v163 = vsel %vm125, %v41, 0
    %v166 = vsel %vm125, %v42, 0
    %v169 = vsel %vm125, %v43, 0
    %v172 = vsel %vm125, %v44, 0
    %v175 = vsel %vm125, %v45, 0
    %v178 = vsel %vm125, %v46, 0
    %v181 = vsel %vm125, %v47, 0
    %v184 = vsel %vm125, %v48, 0
    %v187 = vsel %vm125, %v49, 0
    %v190 = vsel %vm125, %v50, 0
    %v193 = vsel %vm125, %v51, 0
    %v196 = vsel %vm125, %v52, 0
    %v199 = vsel %vm125, %v53, 0
    %v202 = vsel %vm125, %v54, 0
    %v205 = vsel %vm125, %v55, 0
    %v208 = vsel %vm125, %v56, 0
    %v211 = vsel %vm125, %v57, 0
    %v214 = vsel %vm125, %v58, 0
    %v217 = vsel %vm125, %v59, 0
    %v220 = vsel %vm125, %v60, 0
    %v223 = vsel %vm125, %v61, 0
    %v226 = vsel %vm125, %v62, 0
    %v229 = vsel %vm125, %v63, 0
    %v232 = vsel %vm125, %v64, 0
    %v235 = vsel %vm125, %v65, 0
    %v238 = vsel %vm125, %v66, 0
    %v241 = vsel %vm125, %v67, 0
    %v244 = vsel %vm125, %v68, 0
    %v247 = vsel %vm125, %v69, 0
    %v250 = vsel %vm125, %v70, 0
    %v253 = vsel %vm125, %v71, 0
    %v256 = vsel %vm125, %v72, 0
    %v259 = vsel %vm125, %v73, 0
    %v262 = vsel %vm125, %v74, 0
    %v265 = vsel %vm125, %v75, 0
    %v268 = vsel %vm125, %v76, 0
    %v271 = vsel %vm125, %v77, 0
    %v274 = vsel %vm125, %v78, 0
    %v277 = vsel %vm125, %v79, 0
    %v280 = vsel %vm125, %v80, 0
    %v283 = vsel %vm125, %v81, 0
    %v286 = vsel %vm125, %v82, 0
    %v289 = vsel %vm125, %v83, 0
    %v292 = vsel %vm125, %v84, 0
    %v295 = vsel %vm125, %v85, 0
    %v298 = vsel %vm125, %v86, 0
    %v301 = vsel %vm125, %v87, 0
    %v304 = vsel %vm125, %v88, 0
    %v307 = vsel %vm125, %v89, 0
    %v310 = vsel %vm125, %v90, 0
    %v313 = vsel %vm125, %v91, 0
    %v316 = vsel %vm125, %v92, 0
    %v319 = vsel %vm125, %v93, 0
    %v322 = vsel %vm125, %v94, 0
    %v325 = vsel %vm125, %v95, 0
    %v328 = vsel %vm125, %v96, 0
    %v331 = vsel %vm125, %v97, 0
    %v334 = vsel %vm125, %v98, 0
    %v337 = vsel %vm125, %v99, 0
    %v340 = vsel %vm125, %v100, 0
    %v343 = vsel %vm125, %v101, 0
    %v346 = vsel %vm125, %v102, 0
    %v349 = vsel %vm125, %v103, 0
    %v352 = vsel %vm125, %v104, 0
    %v355 = vsel %vm125, %v105, 0
    %v358 = vsel %vm125, %v106, 0
    %v361 = vsel %vm125, %v107, 0
    %v364 = vsel %vm125, %v108, 0
    %v367 = vsel %vm125, %v109, 0
    %v370 = vsel %vm125, %v110, 0
    %v373 = vsel %vm125, %v111, 0
    %v376 = vsel %vm125, %v112, 0
    %v379 = vsel %vm125, %v113, 0
    %v382 = vsel %vm125, %v114, 0
    %v385 = vsel %vm125, %v115, 0
    %v388 = vsel %vm125, %v116, 0
    %v391 = vsel %vm125, %v117, 0
    %v394 = vsel %vm125, %v118, 0
    %v397 = vsel %vm125, %v119, 0
    %v400 = vsel %vm125, %v120, 0
    %v403 = vsel %vm125, %v121, 0
    %v406 = vsel %vm125, %v122, 0
    %v409 = vsel %vm125, %v123, 0
    %v412 = vsel %vm125, %v124, 0
    %414 = vmatprep.subr.mxu0 %v28
    %415 = vmatpush1.msra.mxu0 %v27
    %416 = vmatprep.subr.mxu0 0.0
    %417 = vmatpush1.msra.mxu0 0.0
    %418 = vmatprep.subr.mxu0 0.0
    %419 = vmatpush1.msra.mxu0 0.0
    %420 = vmatprep.subr.mxu0 0.0
    %421 = vmatpush1.msra.mxu0 0.0
    %422 = vmatprep.subr.mxu0 0.0
    %423 = vmatpush1.msra.mxu0 0.0
    %424 = vmatprep.subr.mxu0 0.0
    %425 = vmatpush1.msra.mxu0 0.0
    %426 = vmatprep.subr.mxu0 0.0
    %427 = vmatpush1.msra.mxu0 0.0
    %428 = vmatprep.subr.mxu0 0.0
    %429 = vmatpush1.msra.mxu0 0.0
    %430 = vmatprep.subr.mxu0 0.0
    %431 = vmatpush1.msra.mxu0 0.0
    %432 = vmatprep.subr.mxu0 0.0
    %433 = vmatpush1.msra.mxu0 0.0
    %434 = vmatprep.subr.mxu0 0.0
    %435 = vmatpush1.msra.mxu0 0.0
    %436 = vmatprep.subr.mxu0 0.0
    %437 = vmatpush1.msra.mxu0 0.0
    %438 = vmatprep.subr.mxu0 0.0
    %439 = vmatpush1.msra.mxu0 0.0
    %440 = vmatprep.subr.mxu0 0.0
    %441 = vmatpush1.msra.mxu0 0.0
    %442 = vmatprep.subr.mxu0 0.0
    %443 = vmatpush1.msra.mxu0 0.0
    %444 = vmatprep.subr.mxu0 0.0
    %445 = vmatpush1.msra.mxu0 0.0
    %446 = vmatprep.subr.mxu0 0.0
    %447 = vmatpush1.msra.mxu0 0.0
    %448 = vmatprep.subr.mxu0 0.0
    %449 = vmatpush1.msra.mxu0 0.0
    %450 = vmatprep.subr.mxu0 0.0
    %451 = vmatpush1.msra.mxu0 0.0
    %452 = vmatprep.subr.mxu0 0.0
    %453 = vmatpush1.msra.mxu0 0.0
    %454 = vmatprep.subr.mxu0 0.0
    %455 = vmatpush1.msra.mxu0 0.0
    %456 = vmatprep.subr.mxu0 0.0
    %457 = vmatpush1.msra.mxu0 0.0
    %458 = vmatprep.subr.mxu0 0.0
    %459 = vmatpush1.msra.mxu0 0.0
    %460 = vmatprep.subr.mxu0 0.0
    %461 = vmatpush1.msra.mxu0 0.0
    %462 = vmatprep.subr.mxu0 0.0
    %463 = vmatpush1.msra.mxu0 0.0
    %464 = vmatprep.subr.mxu0 0.0
    %465 = vmatpush1.msra.mxu0 0.0
    %466 = vmatprep.subr.mxu0 0.0
    %467 = vmatpush1.msra.mxu0 0.0
    %468 = vmatprep.subr.mxu0 0.0
    %469 = vmatpush1.msra.mxu0 0.0
    %470 = vmatprep.subr.mxu0 0.0
    %471 = vmatpush1.msra.mxu0 0.0
    %472 = vmatprep.subr.mxu0 0.0
    %473 = vmatpush1.msra.mxu0 0.0
    %474 = vmatprep.subr.mxu0 0.0
    %475 = vmatpush1.msra.mxu0 0.0
    %476 = vmatprep.subr.mxu0 0.0
    %477 = vmatpush1.msra.mxu0 0.0
    %478 = vmatprep.mubr.f32.mxu0 0.0
    %479 = vmatmul.mubr.f32.gmra.mrb[0].mxu0 %v127
    %v480 = vpop.f32.mrb[0].mxu0
    %v481 = vadd.f32 0.0, %v480
    %v482 = vpop.f32.mrb[0].mxu0
    %v483 = vadd.f32 0.0, %v482
    %484 = vmatprep.mubr.f32.mxu0 0.0
    %485 = vmatmul.mubr.f32.gmra.mrb[0].mxu0 %v130
    %v486 = vpop.f32.mrb[0].mxu0
    %v487 = vadd.f32 0.0, %v486
    %v488 = vpop.f32.mrb[0].mxu0
    %v489 = vadd.f32 0.0, %v488
    %490 = vmatprep.mubr.f32.mxu0 0.0
    %491 = vmatmul.mubr.f32.gmra.mrb[0].mxu0 %v133
    %v492 = vpop.f32.mrb[0].mxu0
    %v493 = vadd.f32 0.0, %v492
    %v494 = vpop.f32.mrb[0].mxu0
    %v495 = vadd.f32 0.0, %v494
    %496 = vmatprep.mubr.f32.mxu0 0.0
    %497 = vmatmul.mubr.f32.gmra.mrb[0].mxu0 %v136
    %v498 = vpop.f32.mrb[0].mxu0
    %v499 = vadd.f32 0.0, %v498
    %v500 = vpop.f32.mrb[0].mxu0
    %v501 = vadd.f32 0.0, %v500
    %502 = vmatprep.mubr.f32.mxu0 0.0
    %503 = vmatmul.mubr.f32.gmra.mrb[0].mxu0 %v139
    %v504 = vpop.f32.mrb[0].mxu0
    %v505 = vadd.f32 0.0, %v504
    %v506 = vpop.f32.mrb[0].mxu0
    %v507 = vadd.f32 0.0, %v506
    %508 = vmatprep.mubr.f32.mxu0 0.0
    %509 = vmatmul.mubr.f32.gmra.mrb[0].mxu0 %v142
    %v510 = vpop.f32.mrb[0].mxu0
    %v511 = vadd.f32 0.0, %v510
    %v512 = vpop.f32.mrb[0].mxu0
    %v513 = vadd.f32 0.0, %v512
    %514 = vmatprep.mubr.f32.mxu0 0.0
    %515 = vmatmul.mubr.f32.gmra.mrb[0].mxu0 %v145
    %v516 = vpop.f32.mrb[0].mxu0
    %v517 = vadd.f32 0.0, %v516
    %v518 = vpop.f32.mrb[0].mxu0
    %v519 = vadd.f32 0.0, %v518
    %520 = vmatprep.mubr.f32.mxu0 0.0
    %521 = vmatmul.mubr.f32.gmra.mrb[0].mxu0 %v148
    %v522 = vpop.f32.mrb[0].mxu0
    %v523 = vadd.f32 0.0, %v522
    %v524 = vpop.f32.mrb[0].mxu0
    %v525 = vadd.f32 0.0, %v524
    %526 = vmatprep.mubr.f32.mxu0 0.0
    %527 = vmatmul.mubr.f32.gmra.mrb[0].mxu0 %v151
    %v528 = vpop.f32.mrb[0].mxu0
    %v529 = vadd.f32 0.0, %v528
    %v530 = vpop.f32.mrb[0].mxu0
    %v531 = vadd.f32 0.0, %v530
    %532 = vmatprep.mubr.f32.mxu0 0.0
    %533 = vmatmul.mubr.f32.gmra.mrb[0].mxu0 %v154
    %v534 = vpop.f32.mrb[0].mxu0
    %v535 = vadd.f32 0.0, %v534
    %v536 = vpop.f32.mrb[0].mxu0
    %v537 = vadd.f32 0.0, %v536
    %538 = vmatprep.mubr.f32.mxu0 0.0
    %539 = vmatmul.mubr.f32.gmra.mrb[0].mxu0 %v157
    %v540 = vpop.f32.mrb[0].mxu0
    %v541 = vadd.f32 0.0, %v540
    %v542 = vpop.f32.mrb[0].mxu0
    %v543 = vadd.f32 0.0, %v542
    %544 = vmatprep.mubr.f32.mxu0 0.0
    %545 = vmatmul.mubr.f32.gmra.mrb[0].mxu0 %v160
    %v546 = vpop.f32.mrb[0].mxu0
    %v547 = vadd.f32 0.0, %v546
    %v548 = vpop.f32.mrb[0].mxu0
    %v549 = vadd.f32 0.0, %v548
    %550 = vmatprep.mubr.f32.mxu0 0.0
    %551 = vmatmul.mubr.f32.gmra.mrb[0].mxu0 %v163
    %v552 = vpop.f32.mrb[0].mxu0
    %v553 = vadd.f32 0.0, %v552
    %v554 = vpop.f32.mrb[0].mxu0
    %v555 = vadd.f32 0.0, %v554
    %556 = vmatprep.mubr.f32.mxu0 0.0
    %557 = vmatmul.mubr.f32.gmra.mrb[0].mxu0 %v166
    %v558 = vpop.f32.mrb[0].mxu0
    %v559 = vadd.f32 0.0, %v558
    %v560 = vpop.f32.mrb[0].mxu0
    %v561 = vadd.f32 0.0, %v560
    %562 = vmatprep.mubr.f32.mxu0 0.0
    %563 = vmatmul.mubr.f32.gmra.mrb[0].mxu0 %v169
    %v564 = vpop.f32.mrb[0].mxu0
    %v565 = vadd.f32 0.0, %v564
    %v566 = vpop.f32.mrb[0].mxu0
    %v567 = vadd.f32 0.0, %v566
    %568 = vmatprep.mubr.f32.mxu0 0.0
    %569 = vmatmul.mubr.f32.gmra.mrb[0].mxu0 %v172
    %v570 = vpop.f32.mrb[0].mxu0
    %v571 = vadd.f32 0.0, %v570
    %v572 = vpop.f32.mrb[0].mxu0
    %v573 = vadd.f32 0.0, %v572
    %574 = vmatprep.mubr.f32.mxu0 0.0
    %575 = vmatmul.mubr.f32.gmra.mrb[0].mxu0 %v175
    %v576 = vpop.f32.mrb[0].mxu0
    %v577 = vadd.f32 0.0, %v576
    %v578 = vpop.f32.mrb[0].mxu0
    %v579 = vadd.f32 0.0, %v578
    %580 = vmatprep.mubr.f32.mxu0 0.0
    %581 = vmatmul.mubr.f32.gmra.mrb[0].mxu0 %v178
    %v582 = vpop.f32.mrb[0].mxu0
    %v583 = vadd.f32 0.0, %v582
    %v584 = vpop.f32.mrb[0].mxu0
    %v585 = vadd.f32 0.0, %v584
    %586 = vmatprep.mubr.f32.mxu0 0.0
    %587 = vmatmul.mubr.f32.gmra.mrb[0].mxu0 %v181
    %v588 = vpop.f32.mrb[0].mxu0
    %v589 = vadd.f32 0.0, %v588
    %v590 = vpop.f32.mrb[0].mxu0
    %v591 = vadd.f32 0.0, %v590
    %592 = vmatprep.mubr.f32.mxu0 0.0
    %593 = vmatmul.mubr.f32.gmra.mrb[0].mxu0 %v184
    %v594 = vpop.f32.mrb[0].mxu0
    %v595 = vadd.f32 0.0, %v594
    %v596 = vpop.f32.mrb[0].mxu0
    %v597 = vadd.f32 0.0, %v596
    %598 = vmatprep.mubr.f32.mxu0 0.0
    %599 = vmatmul.mubr.f32.gmra.mrb[0].mxu0 %v187
    %v600 = vpop.f32.mrb[0].mxu0
    %v601 = vadd.f32 0.0, %v600
    %v602 = vpop.f32.mrb[0].mxu0
    %v603 = vadd.f32 0.0, %v602
    %604 = vmatprep.mubr.f32.mxu0 0.0
    %605 = vmatmul.mubr.f32.gmra.mrb[0].mxu0 %v190
    %v606 = vpop.f32.mrb[0].mxu0
    %v607 = vadd.f32 0.0, %v606
    %v608 = vpop.f32.mrb[0].mxu0
    %v609 = vadd.f32 0.0, %v608
    %610 = vmatprep.mubr.f32.mxu0 0.0
    %611 = vmatmul.mubr.f32.gmra.mrb[0].mxu0 %v193
    %v612 = vpop.f32.mrb[0].mxu0
    %v613 = vadd.f32 0.0, %v612
    %v614 = vpop.f32.mrb[0].mxu0
    %v615 = vadd.f32 0.0, %v614
    %616 = vmatprep.mubr.f32.mxu0 0.0
    %617 = vmatmul.mubr.f32.gmra.mrb[0].mxu0 %v196
    %v618 = vpop.f32.mrb[0].mxu0
    %v619 = vadd.f32 0.0, %v618
    %v620 = vpop.f32.mrb[0].mxu0
    %v621 = vadd.f32 0.0, %v620
    %622 = vmatprep.mubr.f32.mxu0 0.0
    %623 = vmatmul.mubr.f32.gmra.mrb[0].mxu0 %v199
    %v624 = vpop.f32.mrb[0].mxu0
    %v625 = vadd.f32 0.0, %v624
    %v626 = vpop.f32.mrb[0].mxu0
    %v627 = vadd.f32 0.0, %v626
    %628 = vmatprep.mubr.f32.mxu0 0.0
    %629 = vmatmul.mubr.f32.gmra.mrb[0].mxu0 %v202
    %v630 = vpop.f32.mrb[0].mxu0
    %v631 = vadd.f32 0.0, %v630
    %v632 = vpop.f32.mrb[0].mxu0
    %v633 = vadd.f32 0.0, %v632
    %634 = vmatprep.mubr.f32.mxu0 0.0
    %635 = vmatmul.mubr.f32.gmra.mrb[0].mxu0 %v205
    %v636 = vpop.f32.mrb[0].mxu0
    %v637 = vadd.f32 0.0, %v636
    %v638 = vpop.f32.mrb[0].mxu0
    %v639 = vadd.f32 0.0, %v638
    %640 = vmatprep.mubr.f32.mxu0 0.0
    %641 = vmatmul.mubr.f32.gmra.mrb[0].mxu0 %v208
    %v642 = vpop.f32.mrb[0].mxu0
    %v643 = vadd.f32 0.0, %v642
    %v644 = vpop.f32.mrb[0].mxu0
    %v645 = vadd.f32 0.0, %v644
    %646 = vmatprep.mubr.f32.mxu0 0.0
    %647 = vmatmul.mubr.f32.gmra.mrb[0].mxu0 %v211
    %v648 = vpop.f32.mrb[0].mxu0
    %v649 = vadd.f32 0.0, %v648
    %v650 = vpop.f32.mrb[0].mxu0
    %v651 = vadd.f32 0.0, %v650
    %652 = vmatprep.mubr.f32.mxu0 0.0
    %653 = vmatmul.mubr.f32.gmra.mrb[0].mxu0 %v214
    %v654 = vpop.f32.mrb[0].mxu0
    %v655 = vadd.f32 0.0, %v654
    %v656 = vpop.f32.mrb[0].mxu0
    %v657 = vadd.f32 0.0, %v656
    %658 = vmatprep.mubr.f32.mxu0 0.0
    %659 = vmatmul.mubr.f32.gmra.mrb[0].mxu0 %v217
    %v660 = vpop.f32.mrb[0].mxu0
    %v661 = vadd.f32 0.0, %v660
    %v662 = vpop.f32.mrb[0].mxu0
    %v663 = vadd.f32 0.0, %v662
    %664 = vmatprep.mubr.f32.mxu0 0.0
    %665 = vmatmul.mubr.f32.gmra.mrb[0].mxu0 %v220
    %v666 = vpop.f32.mrb[0].mxu0
    %v667 = vadd.f32 0.0, %v666
    %v668 = vpop.f32.mrb[0].mxu0
    %v669 = vadd.f32 0.0, %v668
    %670 = vmatprep.mubr.f32.mxu0 0.0
    %671 = vmatmul.mubr.f32.gmra.mrb[0].mxu0 %v223
    %v672 = vpop.f32.mrb[0].mxu0
    %v673 = vadd.f32 0.0, %v672
    %v674 = vpop.f32.mrb[0].mxu0
    %v675 = vadd.f32 0.0, %v674
    %676 = vmatprep.mubr.f32.mxu0 0.0
    %677 = vmatmul.mubr.f32.gmra.mrb[0].mxu0 %v226
    %v678 = vpop.f32.mrb[0].mxu0
    %v679 = vadd.f32 0.0, %v678
    %v680 = vpop.f32.mrb[0].mxu0
    %v681 = vadd.f32 0.0, %v680
    %682 = vmatprep.mubr.f32.mxu0 0.0
    %683 = vmatmul.mubr.f32.gmra.mrb[0].mxu0 %v229
    %v684 = vpop.f32.mrb[0].mxu0
    %v685 = vadd.f32 0.0, %v684
    %v686 = vpop.f32.mrb[0].mxu0
    %v687 = vadd.f32 0.0, %v686
    %688 = vmatprep.mubr.f32.mxu0 0.0
    %689 = vmatmul.mubr.f32.gmra.mrb[0].mxu0 %v232
    %v690 = vpop.f32.mrb[0].mxu0
    %v691 = vadd.f32 0.0, %v690
    %v692 = vpop.f32.mrb[0].mxu0
    %v693 = vadd.f32 0.0, %v692
    %694 = vmatprep.mubr.f32.mxu0 0.0
    %695 = vmatmul.mubr.f32.gmra.mrb[0].mxu0 %v235
    %v696 = vpop.f32.mrb[0].mxu0
    %v697 = vadd.f32 0.0, %v696
    %v698 = vpop.f32.mrb[0].mxu0
    %v699 = vadd.f32 0.0, %v698
    %700 = vmatprep.mubr.f32.mxu0 0.0
    %701 = vmatmul.mubr.f32.gmra.mrb[0].mxu0 %v238
    %v702 = vpop.f32.mrb[0].mxu0
    %v703 = vadd.f32 0.0, %v702
    %v704 = vpop.f32.mrb[0].mxu0
    %v705 = vadd.f32 0.0, %v704
    %706 = vmatprep.mubr.f32.mxu0 0.0
    %707 = vmatmul.mubr.f32.gmra.mrb[0].mxu0 %v241
    %v708 = vpop.f32.mrb[0].mxu0
    %v709 = vadd.f32 0.0, %v708
    %v710 = vpop.f32.mrb[0].mxu0
    %v711 = vadd.f32 0.0, %v710
    %712 = vmatprep.mubr.f32.mxu0 0.0
    %713 = vmatmul.mubr.f32.gmra.mrb[0].mxu0 %v244
    %v714 = vpop.f32.mrb[0].mxu0
    %v715 = vadd.f32 0.0, %v714
    %v716 = vpop.f32.mrb[0].mxu0
    %v717 = vadd.f32 0.0, %v716
    %718 = vmatprep.mubr.f32.mxu0 0.0
    %719 = vmatmul.mubr.f32.gmra.mrb[0].mxu0 %v247
    %v720 = vpop.f32.mrb[0].mxu0
    %v721 = vadd.f32 0.0, %v720
    %v722 = vpop.f32.mrb[0].mxu0
    %v723 = vadd.f32 0.0, %v722
    %724 = vmatprep.mubr.f32.mxu0 0.0
    %725 = vmatmul.mubr.f32.gmra.mrb[0].mxu0 %v250
    %v726 = vpop.f32.mrb[0].mxu0
    %v727 = vadd.f32 0.0, %v726
    %v728 = vpop.f32.mrb[0].mxu0
    %v729 = vadd.f32 0.0, %v728
    %730 = vmatprep.mubr.f32.mxu0 0.0
    %731 = vmatmul.mubr.f32.gmra.mrb[0].mxu0 %v253
    %v732 = vpop.f32.mrb[0].mxu0
    %v733 = vadd.f32 0.0, %v732
    %v734 = vpop.f32.mrb[0].mxu0
    %v735 = vadd.f32 0.0, %v734
    %736 = vmatprep.mubr.f32.mxu0 0.0
    %737 = vmatmul.mubr.f32.gmra.mrb[0].mxu0 %v256
    %v738 = vpop.f32.mrb[0].mxu0
    %v739 = vadd.f32 0.0, %v738
    %v740 = vpop.f32.mrb[0].mxu0
    %v741 = vadd.f32 0.0, %v740
    %742 = vmatprep.mubr.f32.mxu0 0.0
    %743 = vmatmul.mubr.f32.gmra.mrb[0].mxu0 %v259
    %v744 = vpop.f32.mrb[0].mxu0
    %v745 = vadd.f32 0.0, %v744
    %v746 = vpop.f32.mrb[0].mxu0
    %v747 = vadd.f32 0.0, %v746
    %748 = vmatprep.mubr.f32.mxu0 0.0
    %749 = vmatmul.mubr.f32.gmra.mrb[0].mxu0 %v262
    %v750 = vpop.f32.mrb[0].mxu0
    %v751 = vadd.f32 0.0, %v750
    %v752 = vpop.f32.mrb[0].mxu0
    %v753 = vadd.f32 0.0, %v752
    %754 = vmatprep.mubr.f32.mxu0 0.0
    %755 = vmatmul.mubr.f32.gmra.mrb[0].mxu0 %v265
    %v756 = vpop.f32.mrb[0].mxu0
    %v757 = vadd.f32 0.0, %v756
    %v758 = vpop.f32.mrb[0].mxu0
    %v759 = vadd.f32 0.0, %v758
    %760 = vmatprep.mubr.f32.mxu0 0.0
    %761 = vmatmul.mubr.f32.gmra.mrb[0].mxu0 %v268
    %v762 = vpop.f32.mrb[0].mxu0
    %v763 = vadd.f32 0.0, %v762
    %v764 = vpop.f32.mrb[0].mxu0
    %v765 = vadd.f32 0.0, %v764
    %766 = vmatprep.mubr.f32.mxu0 0.0
    %767 = vmatmul.mubr.f32.gmra.mrb[0].mxu0 %v271
    %v768 = vpop.f32.mrb[0].mxu0
    %v769 = vadd.f32 0.0, %v768
    %v770 = vpop.f32.mrb[0].mxu0
    %v771 = vadd.f32 0.0, %v770
    %772 = vmatprep.mubr.f32.mxu0 0.0
    %773 = vmatmul.mubr.f32.gmra.mrb[0].mxu0 %v274
    %v774 = vpop.f32.mrb[0].mxu0
    %v775 = vadd.f32 0.0, %v774
    %v776 = vpop.f32.mrb[0].mxu0
    %v777 = vadd.f32 0.0, %v776
    %778 = vmatprep.mubr.f32.mxu0 0.0
    %779 = vmatmul.mubr.f32.gmra.mrb[0].mxu0 %v277
    %v780 = vpop.f32.mrb[0].mxu0
    %v781 = vadd.f32 0.0, %v780
    %v782 = vpop.f32.mrb[0].mxu0
    %v783 = vadd.f32 0.0, %v782
    %784 = vmatprep.mubr.f32.mxu0 0.0
    %785 = vmatmul.mubr.f32.gmra.mrb[0].mxu0 %v280
    %v786 = vpop.f32.mrb[0].mxu0
    %v787 = vadd.f32 0.0, %v786
    %v788 = vpop.f32.mrb[0].mxu0
    %v789 = vadd.f32 0.0, %v788
    %790 = vmatprep.mubr.f32.mxu0 0.0
    %791 = vmatmul.mubr.f32.gmra.mrb[0].mxu0 %v283
    %v792 = vpop.f32.mrb[0].mxu0
    %v793 = vadd.f32 0.0, %v792
    %v794 = vpop.f32.mrb[0].mxu0
    %v795 = vadd.f32 0.0, %v794
    %796 = vmatprep.mubr.f32.mxu0 0.0
    %797 = vmatmul.mubr.f32.gmra.mrb[0].mxu0 %v286
    %v798 = vpop.f32.mrb[0].mxu0
    %v799 = vadd.f32 0.0, %v798
    %v800 = vpop.f32.mrb[0].mxu0
    %v801 = vadd.f32 0.0, %v800
    %802 = vmatprep.mubr.f32.mxu0 0.0
    %803 = vmatmul.mubr.f32.gmra.mrb[0].mxu0 %v289
    %v804 = vpop.f32.mrb[0].mxu0
    %v805 = vadd.f32 0.0, %v804
    %v806 = vpop.f32.mrb[0].mxu0
    %v807 = vadd.f32 0.0, %v806
    %808 = vmatprep.mubr.f32.mxu0 0.0
    %809 = vmatmul.mubr.f32.gmra.mrb[0].mxu0 %v292
    %v810 = vpop.f32.mrb[0].mxu0
    %v811 = vadd.f32 0.0, %v810
    %v812 = vpop.f32.mrb[0].mxu0
    %v813 = vadd.f32 0.0, %v812
    %814 = vmatprep.mubr.f32.mxu0 0.0
    %815 = vmatmul.mubr.f32.gmra.mrb[0].mxu0 %v295
    %v816 = vpop.f32.mrb[0].mxu0
    %v817 = vadd.f32 0.0, %v816
    %v818 = vpop.f32.mrb[0].mxu0
    %v819 = vadd.f32 0.0, %v818
    %820 = vmatprep.mubr.f32.mxu0 0.0
    %821 = vmatmul.mubr.f32.gmra.mrb[0].mxu0 %v298
    %v822 = vpop.f32.mrb[0].mxu0
    %v823 = vadd.f32 0.0, %v822
    %v824 = vpop.f32.mrb[0].mxu0
    %v825 = vadd.f32 0.0, %v824
    %826 = vmatprep.mubr.f32.mxu0 0.0
    %827 = vmatmul.mubr.f32.gmra.mrb[0].mxu0 %v301
    %v828 = vpop.f32.mrb[0].mxu0
    %v829 = vadd.f32 0.0, %v828
    %v830 = vpop.f32.mrb[0].mxu0
    %v831 = vadd.f32 0.0, %v830
    %832 = vmatprep.mubr.f32.mxu0 0.0
    %833 = vmatmul.mubr.f32.gmra.mrb[0].mxu0 %v304
    %v834 = vpop.f32.mrb[0].mxu0
    %v835 = vadd.f32 0.0, %v834
    %v836 = vpop.f32.mrb[0].mxu0
    %v837 = vadd.f32 0.0, %v836
    %838 = vmatprep.mubr.f32.mxu0 0.0
    %839 = vmatmul.mubr.f32.gmra.mrb[0].mxu0 %v307
    %v840 = vpop.f32.mrb[0].mxu0
    %v841 = vadd.f32 0.0, %v840
    %v842 = vpop.f32.mrb[0].mxu0
    %v843 = vadd.f32 0.0, %v842
    %844 = vmatprep.mubr.f32.mxu0 0.0
    %845 = vmatmul.mubr.f32.gmra.mrb[0].mxu0 %v310
    %v846 = vpop.f32.mrb[0].mxu0
    %v847 = vadd.f32 0.0, %v846
    %v848 = vpop.f32.mrb[0].mxu0
    %v849 = vadd.f32 0.0, %v848
    %850 = vmatprep.mubr.f32.mxu0 0.0
    %851 = vmatmul.mubr.f32.gmra.mrb[0].mxu0 %v313
    %v852 = vpop.f32.mrb[0].mxu0
    %v853 = vadd.f32 0.0, %v852
    %v854 = vpop.f32.mrb[0].mxu0
    %v855 = vadd.f32 0.0, %v854
    %856 = vmatprep.mubr.f32.mxu0 0.0
    %857 = vmatmul.mubr.f32.gmra.mrb[0].mxu0 %v316
    %v858 = vpop.f32.mrb[0].mxu0
    %v859 = vadd.f32 0.0, %v858
    %v860 = vpop.f32.mrb[0].mxu0
    %v861 = vadd.f32 0.0, %v860
    %862 = vmatprep.mubr.f32.mxu0 0.0
    %863 = vmatmul.mubr.f32.gmra.mrb[0].mxu0 %v319
    %v864 = vpop.f32.mrb[0].mxu0
    %v865 = vadd.f32 0.0, %v864
    %v866 = vpop.f32.mrb[0].mxu0
    %v867 = vadd.f32 0.0, %v866
    %868 = vmatprep.mubr.f32.mxu0 0.0
    %869 = vmatmul.mubr.f32.gmra.mrb[0].mxu0 %v322
    %v870 = vpop.f32.mrb[0].mxu0
    %v871 = vadd.f32 0.0, %v870
    %v872 = vpop.f32.mrb[0].mxu0
    %v873 = vadd.f32 0.0, %v872
    %874 = vmatprep.mubr.f32.mxu0 0.0
    %875 = vmatmul.mubr.f32.gmra.mrb[0].mxu0 %v325
    %v876 = vpop.f32.mrb[0].mxu0
    %v877 = vadd.f32 0.0, %v876
    %v878 = vpop.f32.mrb[0].mxu0
    %v879 = vadd.f32 0.0, %v878
    %880 = vmatprep.mubr.f32.mxu0 0.0
    %881 = vmatmul.mubr.f32.gmra.mrb[0].mxu0 %v328
    %v882 = vpop.f32.mrb[0].mxu0
    %v883 = vadd.f32 0.0, %v882
    %v884 = vpop.f32.mrb[0].mxu0
    %v885 = vadd.f32 0.0, %v884
    %886 = vmatprep.mubr.f32.mxu0 0.0
    %887 = vmatmul.mubr.f32.gmra.mrb[0].mxu0 %v331
    %v888 = vpop.f32.mrb[0].mxu0
    %v889 = vadd.f32 0.0, %v888
    %v890 = vpop.f32.mrb[0].mxu0
    %v891 = vadd.f32 0.0, %v890
    %892 = vmatprep.mubr.f32.mxu0 0.0
    %893 = vmatmul.mubr.f32.gmra.mrb[0].mxu0 %v334
    %v894 = vpop.f32.mrb[0].mxu0
    %v895 = vadd.f32 0.0, %v894
    %v896 = vpop.f32.mrb[0].mxu0
    %v897 = vadd.f32 0.0, %v896
    %898 = vmatprep.mubr.f32.mxu0 0.0
    %899 = vmatmul.mubr.f32.gmra.mrb[0].mxu0 %v337
    %v900 = vpop.f32.mrb[0].mxu0
    %v901 = vadd.f32 0.0, %v900
    %v902 = vpop.f32.mrb[0].mxu0
    %v903 = vadd.f32 0.0, %v902
    %904 = vmatprep.mubr.f32.mxu0 0.0
    %905 = vmatmul.mubr.f32.gmra.mrb[0].mxu0 %v340
    %v906 = vpop.f32.mrb[0].mxu0
    %v907 = vadd.f32 0.0, %v906
    %v908 = vpop.f32.mrb[0].mxu0
    %v909 = vadd.f32 0.0, %v908
    %910 = vmatprep.mubr.f32.mxu0 0.0
    %911 = vmatmul.mubr.f32.gmra.mrb[0].mxu0 %v343
    %v912 = vpop.f32.mrb[0].mxu0
    %v913 = vadd.f32 0.0, %v912
    %v914 = vpop.f32.mrb[0].mxu0
    %v915 = vadd.f32 0.0, %v914
    %916 = vmatprep.mubr.f32.mxu0 0.0
    %917 = vmatmul.mubr.f32.gmra.mrb[0].mxu0 %v346
    %v918 = vpop.f32.mrb[0].mxu0
    %v919 = vadd.f32 0.0, %v918
    %v920 = vpop.f32.mrb[0].mxu0
    %v921 = vadd.f32 0.0, %v920
    %922 = vmatprep.mubr.f32.mxu0 0.0
    %923 = vmatmul.mubr.f32.gmra.mrb[0].mxu0 %v349
    %v924 = vpop.f32.mrb[0].mxu0
    %v925 = vadd.f32 0.0, %v924
    %v926 = vpop.f32.mrb[0].mxu0
    %v927 = vadd.f32 0.0, %v926
    %928 = vmatprep.mubr.f32.mxu0 0.0
    %929 = vmatmul.mubr.f32.gmra.mrb[0].mxu0 %v352
    %v930 = vpop.f32.mrb[0].mxu0
    %v931 = vadd.f32 0.0, %v930
    %v932 = vpop.f32.mrb[0].mxu0
    %v933 = vadd.f32 0.0, %v932
    %934 = vmatprep.mubr.f32.mxu0 0.0
    %935 = vmatmul.mubr.f32.gmra.mrb[0].mxu0 %v355
    %v936 = vpop.f32.mrb[0].mxu0
    %v937 = vadd.f32 0.0, %v936
    %v938 = vpop.f32.mrb[0].mxu0
    %v939 = vadd.f32 0.0, %v938
    %940 = vmatprep.mubr.f32.mxu0 0.0
    %941 = vmatmul.mubr.f32.gmra.mrb[0].mxu0 %v358
    %v942 = vpop.f32.mrb[0].mxu0
    %v943 = vadd.f32 0.0, %v942
    %v944 = vpop.f32.mrb[0].mxu0
    %v945 = vadd.f32 0.0, %v944
    %946 = vmatprep.mubr.f32.mxu0 0.0
    %947 = vmatmul.mubr.f32.gmra.mrb[0].mxu0 %v361
    %v948 = vpop.f32.mrb[0].mxu0
    %v949 = vadd.f32 0.0, %v948
    %v950 = vpop.f32.mrb[0].mxu0
    %v951 = vadd.f32 0.0, %v950
    %952 = vmatprep.mubr.f32.mxu0 0.0
    %953 = vmatmul.mubr.f32.gmra.mrb[0].mxu0 %v364
    %v954 = vpop.f32.mrb[0].mxu0
    %v955 = vadd.f32 0.0, %v954
    %v956 = vpop.f32.mrb[0].mxu0
    %v957 = vadd.f32 0.0, %v956
    %958 = vmatprep.mubr.f32.mxu0 0.0
    %959 = vmatmul.mubr.f32.gmra.mrb[0].mxu0 %v367
    %v960 = vpop.f32.mrb[0].mxu0
    %v961 = vadd.f32 0.0, %v960
    %v962 = vpop.f32.mrb[0].mxu0
    %v963 = vadd.f32 0.0, %v962
    %964 = vmatprep.mubr.f32.mxu0 0.0
    %965 = vmatmul.mubr.f32.gmra.mrb[0].mxu0 %v370
    %v966 = vpop.f32.mrb[0].mxu0
    %v967 = vadd.f32 0.0, %v966
    %v968 = vpop.f32.mrb[0].mxu0
    %v969 = vadd.f32 0.0, %v968
    %970 = vmatprep.mubr.f32.mxu0 0.0
    %971 = vmatmul.mubr.f32.gmra.mrb[0].mxu0 %v373
    %v972 = vpop.f32.mrb[0].mxu0
    %v973 = vadd.f32 0.0, %v972
    %v974 = vpop.f32.mrb[0].mxu0
    %v975 = vadd.f32 0.0, %v974
    %976 = vmatprep.mubr.f32.mxu0 0.0
    %977 = vmatmul.mubr.f32.gmra.mrb[0].mxu0 %v376
    %v978 = vpop.f32.mrb[0].mxu0
    %v979 = vadd.f32 0.0, %v978
    %v980 = vpop.f32.mrb[0].mxu0
    %v981 = vadd.f32 0.0, %v980
    %982 = vmatprep.mubr.f32.mxu0 0.0
    %983 = vmatmul.mubr.f32.gmra.mrb[0].mxu0 %v379
    %v984 = vpop.f32.mrb[0].mxu0
    %v985 = vadd.f32 0.0, %v984
    %v986 = vpop.f32.mrb[0].mxu0
    %v987 = vadd.f32 0.0, %v986
    %988 = vmatprep.mubr.f32.mxu0 0.0
    %989 = vmatmul.mubr.f32.gmra.mrb[0].mxu0 %v382
    %v990 = vpop.f32.mrb[0].mxu0
    %v991 = vadd.f32 0.0, %v990
    %v992 = vpop.f32.mrb[0].mxu0
    %v993 = vadd.f32 0.0, %v992
    %994 = vmatprep.mubr.f32.mxu0 0.0
    %995 = vmatmul.mubr.f32.gmra.mrb[0].mxu0 %v385
    %v996 = vpop.f32.mrb[0].mxu0
    %v997 = vadd.f32 0.0, %v996
    %v998 = vpop.f32.mrb[0].mxu0
    %v999 = vadd.f32 0.0, %v998
    %1000 = vmatprep.mubr.f32.mxu0 0.0
    %1001 = vmatmul.mubr.f32.gmra.mrb[0].mxu0 %v388
    %v1002 = vpop.f32.mrb[0].mxu0
    %v1003 = vadd.f32 0.0, %v1002
    %v1004 = vpop.f32.mrb[0].mxu0
    %v1005 = vadd.f32 0.0, %v1004
    %1006 = vmatprep.mubr.f32.mxu0 0.0
    %1007 = vmatmul.mubr.f32.gmra.mrb[0].mxu0 %v391
    %v1008 = vpop.f32.mrb[0].mxu0
    %v1009 = vadd.f32 0.0, %v1008
    %v1010 = vpop.f32.mrb[0].mxu0
    %v1011 = vadd.f32 0.0, %v1010
    %1012 = vmatprep.mubr.f32.mxu0 0.0
    %1013 = vmatmul.mubr.f32.gmra.mrb[0].mxu0 %v394
    %v1014 = vpop.f32.mrb[0].mxu0
    %v1015 = vadd.f32 0.0, %v1014
    %v1016 = vpop.f32.mrb[0].mxu0
    %v1017 = vadd.f32 0.0, %v1016
    %1018 = vmatprep.mubr.f32.mxu0 0.0
    %1019 = vmatmul.mubr.f32.gmra.mrb[0].mxu0 %v397
    %v1020 = vpop.f32.mrb[0].mxu0
    %v1021 = vadd.f32 0.0, %v1020
    %v1022 = vpop.f32.mrb[0].mxu0
    %v1023 = vadd.f32 0.0, %v1022
    %1024 = vmatprep.mubr.f32.mxu0 0.0
    %1025 = vmatmul.mubr.f32.gmra.mrb[0].mxu0 %v400
    %v1026 = vpop.f32.mrb[0].mxu0
    %v1027 = vadd.f32 0.0, %v1026
    %v1028 = vpop.f32.mrb[0].mxu0
    %v1029 = vadd.f32 0.0, %v1028
    %1030 = vmatprep.mubr.f32.mxu0 0.0
    %1031 = vmatmul.mubr.f32.gmra.mrb[0].mxu0 %v403
    %v1032 = vpop.f32.mrb[0].mxu0
    %v1033 = vadd.f32 0.0, %v1032
    %v1034 = vpop.f32.mrb[0].mxu0
    %v1035 = vadd.f32 0.0, %v1034
    %1036 = vmatprep.mubr.f32.mxu0 0.0
    %1037 = vmatmul.mubr.f32.gmra.mrb[0].mxu0 %v406
    %v1038 = vpop.f32.mrb[0].mxu0
    %v1039 = vadd.f32 0.0, %v1038
    %v1040 = vpop.f32.mrb[0].mxu0
    %v1041 = vadd.f32 0.0, %v1040
    %1042 = vmatprep.mubr.f32.mxu0 0.0
    %1043 = vmatmul.mubr.f32.gmra.mrb[0].mxu0 %v409
    %v1044 = vpop.f32.mrb[0].mxu0
    %v1045 = vadd.f32 0.0, %v1044
    %v1046 = vpop.f32.mrb[0].mxu0
    %v1047 = vadd.f32 0.0, %v1046
    %1048 = vmatprep.mubr.f32.mxu0 0.0
    %1049 = vmatmul.mubr.f32.gmra.mrb[0].mxu0 %v412
    %v1050 = vpop.f32.mrb[0].mxu0
    %v1051 = vadd.f32 0.0, %v1050
    %v1052 = vpop.f32.mrb[0].mxu0
    %v1053 = vadd.f32 0.0, %v1052
    %1054 = vdwg.mxu0
    %v1055 = vmax.f32 %v481, %v487
    %v1056 = vmax.f32 %v1055, %v493
    %v1057 = vmax.f32 %v1056, %v499
    %v1058 = vrot.slane %v1057, 4
    %v1059 = vmax.f32 %v1057, %v1058
    %v1060 = vrot.slane %v1059, 2
    %v1061 = vmax.f32 %v1059, %v1060
    %v1062 = vrot.slane %v1061, 1
    %v1063 = vmax.f32 %v1061, %v1062
    %v1064 = vmax.f32 %v483, %v489
    %v1065 = vmax.f32 %v1064, %v495
    %v1066 = vmax.f32 %v1065, %v501
    %v1067 = vrot.slane %v1066, 4
    %v1068 = vmax.f32 %v1066, %v1067
    %v1069 = vrot.slane %v1068, 2
    %v1070 = vmax.f32 %v1068, %v1069
    %v1071 = vrot.slane %v1070, 1
    %v1072 = vmax.f32 %v1070, %v1071
    %v1073 = vmax.f32 %v505, %v511
    %v1074 = vmax.f32 %v1073, %v517
    %v1075 = vmax.f32 %v1074, %v523
    %v1076 = vrot.slane %v1075, 4
    %v1077 = vmax.f32 %v1075, %v1076
    %v1078 = vrot.slane %v1077, 2
    %v1079 = vmax.f32 %v1077, %v1078
    %v1080 = vrot.slane %v1079, 1
    %v1081 = vmax.f32 %v1079, %v1080
    %v1082 = vmax.f32 %v507, %v513
    %v1083 = vmax.f32 %v1082, %v519
    %v1084 = vmax.f32 %v1083, %v525
    %v1085 = vrot.slane %v1084, 4
    %v1086 = vmax.f32 %v1084, %v1085
    %v1087 = vrot.slane %v1086, 2
    %v1088 = vmax.f32 %v1086, %v1087
    %v1089 = vrot.slane %v1088, 1
    %v1090 = vmax.f32 %v1088, %v1089
    %v1091 = vmax.f32 %v529, %v535
    %v1092 = vmax.f32 %v1091, %v541
    %v1093 = vmax.f32 %v1092, %v547
    %v1094 = vrot.slane %v1093, 4
    %v1095 = vmax.f32 %v1093, %v1094
    %v1096 = vrot.slane %v1095, 2
    %v1097 = vmax.f32 %v1095, %v1096
    %v1098 = vrot.slane %v1097, 1
    %v1099 = vmax.f32 %v1097, %v1098
    %v1100 = vmax.f32 %v531, %v537
    %v1101 = vmax.f32 %v1100, %v543
    %v1102 = vmax.f32 %v1101, %v549
    %v1103 = vrot.slane %v1102, 4
    %v1104 = vmax.f32 %v1102, %v1103
    %v1105 = vrot.slane %v1104, 2
    %v1106 = vmax.f32 %v1104, %v1105
    %v1107 = vrot.slane %v1106, 1
    %v1108 = vmax.f32 %v1106, %v1107
    %v1109 = vmax.f32 %v553, %v559
    %v1110 = vmax.f32 %v1109, %v565
    %v1111 = vmax.f32 %v1110, %v571
    %v1112 = vrot.slane %v1111, 4
    %v1113 = vmax.f32 %v1111, %v1112
    %v1114 = vrot.slane %v1113, 2
    %v1115 = vmax.f32 %v1113, %v1114
    %v1116 = vrot.slane %v1115, 1
    %v1117 = vmax.f32 %v1115, %v1116
    %v1118 = vmax.f32 %v555, %v561
    %v1119 = vmax.f32 %v1118, %v567
    %v1120 = vmax.f32 %v1119, %v573
    %v1121 = vrot.slane %v1120, 4
    %v1122 = vmax.f32 %v1120, %v1121
    %v1123 = vrot.slane %v1122, 2
    %v1124 = vmax.f32 %v1122, %v1123
    %v1125 = vrot.slane %v1124, 1
    %v1126 = vmax.f32 %v1124, %v1125
    %v1127 = vmax.f32 %v577, %v583
    %v1128 = vmax.f32 %v1127, %v589
    %v1129 = vmax.f32 %v1128, %v595
    %v1130 = vrot.slane %v1129, 4
    %v1131 = vmax.f32 %v1129, %v1130
    %v1132 = vrot.slane %v1131, 2
    %v1133 = vmax.f32 %v1131, %v1132
    %v1134 = vrot.slane %v1133, 1
    %v1135 = vmax.f32 %v1133, %v1134
    %v1136 = vmax.f32 %v579, %v585
    %v1137 = vmax.f32 %v1136, %v591
    %v1138 = vmax.f32 %v1137, %v597
    %v1139 = vrot.slane %v1138, 4
    %v1140 = vmax.f32 %v1138, %v1139
    %v1141 = vrot.slane %v1140, 2
    %v1142 = vmax.f32 %v1140, %v1141
    %v1143 = vrot.slane %v1142, 1
    %v1144 = vmax.f32 %v1142, %v1143
    %v1145 = vmax.f32 %v601, %v607
    %v1146 = vmax.f32 %v1145, %v613
    %v1147 = vmax.f32 %v1146, %v619
    %v1148 = vrot.slane %v1147, 4
    %v1149 = vmax.f32 %v1147, %v1148
    %v1150 = vrot.slane %v1149, 2
    %v1151 = vmax.f32 %v1149, %v1150
    %v1152 = vrot.slane %v1151, 1
    %v1153 = vmax.f32 %v1151, %v1152
    %v1154 = vmax.f32 %v603, %v609
    %v1155 = vmax.f32 %v1154, %v615
    %v1156 = vmax.f32 %v1155, %v621
    %v1157 = vrot.slane %v1156, 4
    %v1158 = vmax.f32 %v1156, %v1157
    %v1159 = vrot.slane %v1158, 2
    %v1160 = vmax.f32 %v1158, %v1159
    %v1161 = vrot.slane %v1160, 1
    %v1162 = vmax.f32 %v1160, %v1161
    %v1163 = vmax.f32 %v625, %v631
    %v1164 = vmax.f32 %v1163, %v637
    %v1165 = vmax.f32 %v1164, %v643
    %v1166 = vrot.slane %v1165, 4
    %v1167 = vmax.f32 %v1165, %v1166
    %v1168 = vrot.slane %v1167, 2
    %v1169 = vmax.f32 %v1167, %v1168
    %v1170 = vrot.slane %v1169, 1
    %v1171 = vmax.f32 %v1169, %v1170
    %v1172 = vmax.f32 %v627, %v633
    %v1173 = vmax.f32 %v1172, %v639
    %v1174 = vmax.f32 %v1173, %v645
    %v1175 = vrot.slane %v1174, 4
    %v1176 = vmax.f32 %v1174, %v1175
    %v1177 = vrot.slane %v1176, 2
    %v1178 = vmax.f32 %v1176, %v1177
    %v1179 = vrot.slane %v1178, 1
    %v1180 = vmax.f32 %v1178, %v1179
    %v1181 = vmax.f32 %v649, %v655
    %v1182 = vmax.f32 %v1181, %v661
    %v1183 = vmax.f32 %v1182, %v667
    %v1184 = vrot.slane %v1183, 4
    %v1185 = vmax.f32 %v1183, %v1184
    %v1186 = vrot.slane %v1185, 2
    %v1187 = vmax.f32 %v1185, %v1186
    %v1188 = vrot.slane %v1187, 1
    %v1189 = vmax.f32 %v1187, %v1188
    %v1190 = vmax.f32 %v651, %v657
    %v1191 = vmax.f32 %v1190, %v663
    %v1192 = vmax.f32 %v1191, %v669
    %v1193 = vrot.slane %v1192, 4
    %v1194 = vmax.f32 %v1192, %v1193
    %v1195 = vrot.slane %v1194, 2
    %v1196 = vmax.f32 %v1194, %v1195
    %v1197 = vrot.slane %v1196, 1
    %v1198 = vmax.f32 %v1196, %v1197
    %v1199 = vsub.f32 %v481, %v1063
    %v1200 = vsub.f32 %v483, %v1072
    %v1201 = vsub.f32 %v487, %v1063
    %v1202 = vsub.f32 %v489, %v1072
    %v1203 = vsub.f32 %v493, %v1063
    %v1204 = vsub.f32 %v495, %v1072
    %v1205 = vsub.f32 %v499, %v1063
    %v1206 = vsub.f32 %v501, %v1072
    %v1207 = vsub.f32 %v505, %v1081
    %v1208 = vsub.f32 %v507, %v1090
    %v1209 = vsub.f32 %v511, %v1081
    %v1210 = vsub.f32 %v513, %v1090
    %v1211 = vsub.f32 %v517, %v1081
    %v1212 = vsub.f32 %v519, %v1090
    %v1213 = vsub.f32 %v523, %v1081
    %v1214 = vsub.f32 %v525, %v1090
    %v1215 = vsub.f32 %v529, %v1099
    %v1216 = vsub.f32 %v531, %v1108
    %v1217 = vsub.f32 %v535, %v1099
    %v1218 = vsub.f32 %v537, %v1108
    %v1219 = vsub.f32 %v541, %v1099
    %v1220 = vsub.f32 %v543, %v1108
    %v1221 = vsub.f32 %v547, %v1099
    %v1222 = vsub.f32 %v549, %v1108
    %v1223 = vsub.f32 %v553, %v1117
    %v1224 = vsub.f32 %v555, %v1126
    %v1225 = vsub.f32 %v559, %v1117
    %v1226 = vsub.f32 %v561, %v1126
    %v1227 = vsub.f32 %v565, %v1117
    %v1228 = vsub.f32 %v567, %v1126
    %v1229 = vsub.f32 %v571, %v1117
    %v1230 = vsub.f32 %v573, %v1126
    %v1231 = vsub.f32 %v577, %v1135
    %v1232 = vsub.f32 %v579, %v1144
    %v1233 = vsub.f32 %v583, %v1135
    %v1234 = vsub.f32 %v585, %v1144
    %v1235 = vsub.f32 %v589, %v1135
    %v1236 = vsub.f32 %v591, %v1144
    %v1237 = vsub.f32 %v595, %v1135
    %v1238 = vsub.f32 %v597, %v1144
    %v1239 = vsub.f32 %v601, %v1153
    %v1240 = vsub.f32 %v603, %v1162
    %v1241 = vsub.f32 %v607, %v1153
    %v1242 = vsub.f32 %v609, %v1162
    %v1243 = vsub.f32 %v613, %v1153
    %v1244 = vsub.f32 %v615, %v1162
    %v1245 = vsub.f32 %v619, %v1153
    %v1246 = vsub.f32 %v621, %v1162
    %v1247 = vsub.f32 %v625, %v1171
    %v1248 = vsub.f32 %v627, %v1180
    %v1249 = vsub.f32 %v631, %v1171
    %v1250 = vsub.f32 %v633, %v1180
    %v1251 = vsub.f32 %v637, %v1171
    %v1252 = vsub.f32 %v639, %v1180
    %v1253 = vsub.f32 %v643, %v1171
    %v1254 = vsub.f32 %v645, %v1180
    %v1255 = vsub.f32 %v649, %v1189
    %v1256 = vsub.f32 %v651, %v1198
    %v1257 = vsub.f32 %v655, %v1189
    %v1258 = vsub.f32 %v657, %v1198
    %v1259 = vsub.f32 %v661, %v1189
    %v1260 = vsub.f32 %v663, %v1198
    %v1261 = vsub.f32 %v667, %v1189
    %v1262 = vsub.f32 %v669, %v1198
    %v1263 = vmul.f32 %v1199, 1.442695
    %v1264 = vpow.pop %v1263
    %v1265 = vmul.f32 %v1200, 1.442695
    %v1266 = vpow.pop %v1265
    %v1267 = vmul.f32 %v1201, 1.442695
    %v1268 = vpow.pop %v1267
    %v1269 = vmul.f32 %v1202, 1.442695
    %v1270 = vpow.pop %v1269
    %v1271 = vmul.f32 %v1203, 1.442695
    %v1272 = vpow.pop %v1271
    %v1273 = vmul.f32 %v1204, 1.442695
    %v1274 = vpow.pop %v1273
    %v1275 = vmul.f32 %v1205, 1.442695
    %v1276 = vpow.pop %v1275
    %v1277 = vmul.f32 %v1206, 1.442695
    %v1278 = vpow.pop %v1277
    %v1279 = vmul.f32 %v1207, 1.442695
    %v1280 = vpow.pop %v1279
    %v1281 = vmul.f32 %v1208, 1.442695
    %v1282 = vpow.pop %v1281
    %v1283 = vmul.f32 %v1209, 1.442695
    %v1284 = vpow.pop %v1283
    %v1285 = vmul.f32 %v1210, 1.442695
    %v1286 = vpow.pop %v1285
    %v1287 = vmul.f32 %v1211, 1.442695
    %v1288 = vpow.pop %v1287
    %v1289 = vmul.f32 %v1212, 1.442695
    %v1290 = vpow.pop %v1289
    %v1291 = vmul.f32 %v1213, 1.442695
    %v1292 = vpow.pop %v1291
    %v1293 = vmul.f32 %v1214, 1.442695
    %v1294 = vpow.pop %v1293
    %v1295 = vmul.f32 %v1215, 1.442695
    %v1296 = vpow.pop %v1295
    %v1297 = vmul.f32 %v1216, 1.442695
    %v1298 = vpow.pop %v1297
    %v1299 = vmul.f32 %v1217, 1.442695
    %v1300 = vpow.pop %v1299
    %v1301 = vmul.f32 %v1218, 1.442695
    %v1302 = vpow.pop %v1301
    %v1303 = vmul.f32 %v1219, 1.442695
    %v1304 = vpow.pop %v1303
    %v1305 = vmul.f32 %v1220, 1.442695
    %v1306 = vpow.pop %v1305
    %v1307 = vmul.f32 %v1221, 1.442695
    %v1308 = vpow.pop %v1307
    %v1309 = vmul.f32 %v1222, 1.442695
    %v1310 = vpow.pop %v1309
    %v1311 = vmul.f32 %v1223, 1.442695
    %v1312 = vpow.pop %v1311
    %v1313 = vmul.f32 %v1224, 1.442695
    %v1314 = vpow.pop %v1313
    %v1315 = vmul.f32 %v1225, 1.442695
    %v1316 = vpow.pop %v1315
    %v1317 = vmul.f32 %v1226, 1.442695
    %v1318 = vpow.pop %v1317
    %v1319 = vmul.f32 %v1227, 1.442695
    %v1320 = vpow.pop %v1319
    %v1321 = vmul.f32 %v1228, 1.442695
    %v1322 = vpow.pop %v1321
    %v1323 = vmul.f32 %v1229, 1.442695
    %v1324 = vpow.pop %v1323
    %v1325 = vmul.f32 %v1230, 1.442695
    %v1326 = vpow.pop %v1325
    %v1327 = vmul.f32 %v1231, 1.442695
    %v1328 = vpow.pop %v1327
    %v1329 = vmul.f32 %v1232, 1.442695
    %v1330 = vpow.pop %v1329
    %v1331 = vmul.f32 %v1233, 1.442695
    %v1332 = vpow.pop %v1331
    %v1333 = vmul.f32 %v1234, 1.442695
    %v1334 = vpow.pop %v1333
    %v1335 = vmul.f32 %v1235, 1.442695
    %v1336 = vpow.pop %v1335
    %v1337 = vmul.f32 %v1236, 1.442695
    %v1338 = vpow.pop %v1337
    %v1339 = vmul.f32 %v1237, 1.442695
    %v1340 = vpow.pop %v1339
    %v1341 = vmul.f32 %v1238, 1.442695
    %v1342 = vpow.pop %v1341
    %v1343 = vmul.f32 %v1239, 1.442695
    %v1344 = vpow.pop %v1343
    %v1345 = vmul.f32 %v1240, 1.442695
    %v1346 = vpow.pop %v1345
    %v1347 = vmul.f32 %v1241, 1.442695
    %v1348 = vpow.pop %v1347
    %v1349 = vmul.f32 %v1242, 1.442695
    %v1350 = vpow.pop %v1349
    %v1351 = vmul.f32 %v1243, 1.442695
    %v1352 = vpow.pop %v1351
    %v1353 = vmul.f32 %v1244, 1.442695
    %v1354 = vpow.pop %v1353
    %v1355 = vmul.f32 %v1245, 1.442695
    %v1356 = vpow.pop %v1355
    %v1357 = vmul.f32 %v1246, 1.442695
    %v1358 = vpow.pop %v1357
    %v1359 = vmul.f32 %v1247, 1.442695
    %v1360 = vpow.pop %v1359
    %v1361 = vmul.f32 %v1248, 1.442695
    %v1362 = vpow.pop %v1361
    %v1363 = vmul.f32 %v1249, 1.442695
    %v1364 = vpow.pop %v1363
    %v1365 = vmul.f32 %v1250, 1.442695
    %v1366 = vpow.pop %v1365
    %v1367 = vmul.f32 %v1251, 1.442695
    %v1368 = vpow.pop %v1367
    %v1369 = vmul.f32 %v1252, 1.442695
    %v1370 = vpow.pop %v1369
    %v1371 = vmul.f32 %v1253, 1.442695
    %v1372 = vpow.pop %v1371
    %v1373 = vmul.f32 %v1254, 1.442695
    %v1374 = vpow.pop %v1373
    %v1375 = vmul.f32 %v1255, 1.442695
    %v1376 = vpow.pop %v1375
    %v1377 = vmul.f32 %v1256, 1.442695
    %v1378 = vpow.pop %v1377
    %v1379 = vmul.f32 %v1257, 1.442695
    %v1380 = vpow.pop %v1379
    %v1381 = vmul.f32 %v1258, 1.442695
    %v1382 = vpow.pop %v1381
    %v1383 = vmul.f32 %v1259, 1.442695
    %v1384 = vpow.pop %v1383
    %v1385 = vmul.f32 %v1260, 1.442695
    %v1386 = vpow.pop %v1385
    %v1387 = vmul.f32 %v1261, 1.442695
    %v1388 = vpow.pop %v1387
    %v1389 = vmul.f32 %v1262, 1.442695
    %v1390 = vpow.pop %v1389
    %v1391 = vadd.f32 %v1264, %v1268
    %v1392 = vadd.f32 %v1391, %v1272
    %v1393 = vadd.f32 %v1392, %v1276
    %v1394 = vrot.slane %v1393, 4
    %v1395 = vadd.f32 %v1393, %v1394
    %v1396 = vrot.slane %v1395, 2
    %v1397 = vadd.f32 %v1395, %v1396
    %v1398 = vrot.slane %v1397, 1
    %v1399 = vadd.f32 %v1397, %v1398
    %v1400 = vadd.f32 %v1266, %v1270
    %v1401 = vadd.f32 %v1400, %v1274
    %v1402 = vadd.f32 %v1401, %v1278
    %v1403 = vrot.slane %v1402, 4
    %v1404 = vadd.f32 %v1402, %v1403
    %v1405 = vrot.slane %v1404, 2
    %v1406 = vadd.f32 %v1404, %v1405
    %v1407 = vrot.slane %v1406, 1
    %v1408 = vadd.f32 %v1406, %v1407
    %v1409 = vadd.f32 %v1280, %v1284
    %v1410 = vadd.f32 %v1409, %v1288
    %v1411 = vadd.f32 %v1410, %v1292
    %v1412 = vrot.slane %v1411, 4
    %v1413 = vadd.f32 %v1411, %v1412
    %v1414 = vrot.slane %v1413, 2
    %v1415 = vadd.f32 %v1413, %v1414
    %v1416 = vrot.slane %v1415, 1
    %v1417 = vadd.f32 %v1415, %v1416
    %v1418 = vadd.f32 %v1282, %v1286
    %v1419 = vadd.f32 %v1418, %v1290
    %v1420 = vadd.f32 %v1419, %v1294
    %v1421 = vrot.slane %v1420, 4
    %v1422 = vadd.f32 %v1420, %v1421
    %v1423 = vrot.slane %v1422, 2
    %v1424 = vadd.f32 %v1422, %v1423
    %v1425 = vrot.slane %v1424, 1
    %v1426 = vadd.f32 %v1424, %v1425
    %v1427 = vadd.f32 %v1296, %v1300
    %v1428 = vadd.f32 %v1427, %v1304
    %v1429 = vadd.f32 %v1428, %v1308
    %v1430 = vrot.slane %v1429, 4
    %v1431 = vadd.f32 %v1429, %v1430
    %v1432 = vrot.slane %v1431, 2
    %v1433 = vadd.f32 %v1431, %v1432
    %v1434 = vrot.slane %v1433, 1
    %v1435 = vadd.f32 %v1433, %v1434
    %v1436 = vadd.f32 %v1298, %v1302
    %v1437 = vadd.f32 %v1436, %v1306
    %v1438 = vadd.f32 %v1437, %v1310
    %v1439 = vrot.slane %v1438, 4
    %v1440 = vadd.f32 %v1438, %v1439
    %v1441 = vrot.slane %v1440, 2
    %v1442 = vadd.f32 %v1440, %v1441
    %v1443 = vrot.slane %v1442, 1
    %v1444 = vadd.f32 %v1442, %v1443
    %v1445 = vadd.f32 %v1312, %v1316
    %v1446 = vadd.f32 %v1445, %v1320
    %v1447 = vadd.f32 %v1446, %v1324
    %v1448 = vrot.slane %v1447, 4
    %v1449 = vadd.f32 %v1447, %v1448
    %v1450 = vrot.slane %v1449, 2
    %v1451 = vadd.f32 %v1449, %v1450
    %v1452 = vrot.slane %v1451, 1
    %v1453 = vadd.f32 %v1451, %v1452
    %v1454 = vadd.f32 %v1314, %v1318
    %v1455 = vadd.f32 %v1454, %v1322
    %v1456 = vadd.f32 %v1455, %v1326
    %v1457 = vrot.slane %v1456, 4
    %v1458 = vadd.f32 %v1456, %v1457
    %v1459 = vrot.slane %v1458, 2
    %v1460 = vadd.f32 %v1458, %v1459
    %v1461 = vrot.slane %v1460, 1
    %v1462 = vadd.f32 %v1460, %v1461
    %v1463 = vadd.f32 %v1328, %v1332
    %v1464 = vadd.f32 %v1463, %v1336
    %v1465 = vadd.f32 %v1464, %v1340
    %v1466 = vrot.slane %v1465, 4
    %v1467 = vadd.f32 %v1465, %v1466
    %v1468 = vrot.slane %v1467, 2
    %v1469 = vadd.f32 %v1467, %v1468
    %v1470 = vrot.slane %v1469, 1
    %v1471 = vadd.f32 %v1469, %v1470
    %v1472 = vadd.f32 %v1330, %v1334
    %v1473 = vadd.f32 %v1472, %v1338
    %v1474 = vadd.f32 %v1473, %v1342
    %v1475 = vrot.slane %v1474, 4
    %v1476 = vadd.f32 %v1474, %v1475
    %v1477 = vrot.slane %v1476, 2
    %v1478 = vadd.f32 %v1476, %v1477
    %v1479 = vrot.slane %v1478, 1
    %v1480 = vadd.f32 %v1478, %v1479
    %v1481 = vadd.f32 %v1344, %v1348
    %v1482 = vadd.f32 %v1481, %v1352
    %v1483 = vadd.f32 %v1482, %v1356
    %v1484 = vrot.slane %v1483, 4
    %v1485 = vadd.f32 %v1483, %v1484
    %v1486 = vrot.slane %v1485, 2
    %v1487 = vadd.f32 %v1485, %v1486
    %v1488 = vrot.slane %v1487, 1
    %v1489 = vadd.f32 %v1487, %v1488
    %v1490 = vadd.f32 %v1346, %v1350
    %v1491 = vadd.f32 %v1490, %v1354
    %v1492 = vadd.f32 %v1491, %v1358
    %v1493 = vrot.slane %v1492, 4
    %v1494 = vadd.f32 %v1492, %v1493
    %v1495 = vrot.slane %v1494, 2
    %v1496 = vadd.f32 %v1494, %v1495
    %v1497 = vrot.slane %v1496, 1
    %v1498 = vadd.f32 %v1496, %v1497
    %v1499 = vadd.f32 %v1360, %v1364
    %v1500 = vadd.f32 %v1499, %v1368
    %v1501 = vadd.f32 %v1500, %v1372
    %v1502 = vrot.slane %v1501, 4
    %v1503 = vadd.f32 %v1501, %v1502
    %v1504 = vrot.slane %v1503, 2
    %v1505 = vadd.f32 %v1503, %v1504
    %v1506 = vrot.slane %v1505, 1
    %v1507 = vadd.f32 %v1505, %v1506
    %v1508 = vadd.f32 %v1362, %v1366
    %v1509 = vadd.f32 %v1508, %v1370
    %v1510 = vadd.f32 %v1509, %v1374
    %v1511 = vrot.slane %v1510, 4
    %v1512 = vadd.f32 %v1510, %v1511
    %v1513 = vrot.slane %v1512, 2
    %v1514 = vadd.f32 %v1512, %v1513
    %v1515 = vrot.slane %v1514, 1
    %v1516 = vadd.f32 %v1514, %v1515
    %v1517 = vadd.f32 %v1376, %v1380
    %v1518 = vadd.f32 %v1517, %v1384
    %v1519 = vadd.f32 %v1518, %v1388
    %v1520 = vrot.slane %v1519, 4
    %v1521 = vadd.f32 %v1519, %v1520
    %v1522 = vrot.slane %v1521, 2
    %v1523 = vadd.f32 %v1521, %v1522
    %v1524 = vrot.slane %v1523, 1
    %v1525 = vadd.f32 %v1523, %v1524
    %v1526 = vadd.f32 %v1378, %v1382
    %v1527 = vadd.f32 %v1526, %v1386
    %v1528 = vadd.f32 %v1527, %v1390
    %v1529 = vrot.slane %v1528, 4
    %v1530 = vadd.f32 %v1528, %v1529
    %v1531 = vrot.slane %v1530, 2
    %v1532 = vadd.f32 %v1530, %v1531
    %v1533 = vrot.slane %v1532, 1
    %v1534 = vadd.f32 %v1532, %v1533
    %v1535 = vrcp.pop %v1399
    %v1536 = vrcp.pop %v1408
    %v1537 = vrcp.pop %v1417
    %v1538 = vrcp.pop %v1426
    %v1539 = vrcp.pop %v1435
    %v1540 = vrcp.pop %v1444
    %v1541 = vrcp.pop %v1453
    %v1542 = vrcp.pop %v1462
    %v1543 = vrcp.pop %v1471
    %v1544 = vrcp.pop %v1480
    %v1545 = vrcp.pop %v1489
    %v1546 = vrcp.pop %v1498
    %v1547 = vrcp.pop %v1507
    %v1548 = vrcp.pop %v1516
    %v1549 = vrcp.pop %v1525
    %v1550 = vrcp.pop %v1534
    %v1551 = vmul.f32 %v1535, 0.17677669
    %v1552 = vmul.f32 %v1536, 0.17677669
    %v1553 = vmul.f32 %v1537, 0.17677669
    %v1554 = vmul.f32 %v1538, 0.17677669
    %v1555 = vmul.f32 %v1539, 0.17677669
    %v1556 = vmul.f32 %v1540, 0.17677669
    %v1557 = vmul.f32 %v1541, 0.17677669
    %v1558 = vmul.f32 %v1542, 0.17677669
    %v1559 = vmul.f32 %v1543, 0.17677669
    %v1560 = vmul.f32 %v1544, 0.17677669
    %v1561 = vmul.f32 %v1545, 0.17677669
    %v1562 = vmul.f32 %v1546, 0.17677669
    %v1563 = vmul.f32 %v1547, 0.17677669
    %v1564 = vmul.f32 %v1548, 0.17677669
    %v1565 = vmul.f32 %v1549, 0.17677669
    %v1566 = vmul.f32 %v1550, 0.17677669
    %v1567 = vmul.f32 %v1264, %v1551
    %v1568 = vmul.f32 %v1266, %v1552
    %v1569 = vmul.f32 %v1268, %v1551
    %v1570 = vmul.f32 %v1270, %v1552
    %v1571 = vmul.f32 %v1272, %v1551
    %v1572 = vmul.f32 %v1274, %v1552
    %v1573 = vmul.f32 %v1276, %v1551
    %v1574 = vmul.f32 %v1278, %v1552
    %v1575 = vmul.f32 %v1280, %v1553
    %v1576 = vmul.f32 %v1282, %v1554
    %v1577 = vmul.f32 %v1284, %v1553
    %v1578 = vmul.f32 %v1286, %v1554
    %v1579 = vmul.f32 %v1288, %v1553
    %v1580 = vmul.f32 %v1290, %v1554
    %v1581 = vmul.f32 %v1292, %v1553
    %v1582 = vmul.f32 %v1294, %v1554
    %v1583 = vmul.f32 %v1296, %v1555
    %v1584 = vmul.f32 %v1298, %v1556
    %v1585 = vmul.f32 %v1300, %v1555
    %v1586 = vmul.f32 %v1302, %v1556
    %v1587 = vmul.f32 %v1304, %v1555
    %v1588 = vmul.f32 %v1306, %v1556
    %v1589 = vmul.f32 %v1308, %v1555
    %v1590 = vmul.f32 %v1310, %v1556
    %v1591 = vmul.f32 %v1312, %v1557
    %v1592 = vmul.f32 %v1314, %v1558
    %v1593 = vmul.f32 %v1316, %v1557
    %v1594 = vmul.f32 %v1318, %v1558
    %v1595 = vmul.f32 %v1320, %v1557
    %v1596 = vmul.f32 %v1322, %v1558
    %v1597 = vmul.f32 %v1324, %v1557
    %v1598 = vmul.f32 %v1326, %v1558
    %v1599 = vmul.f32 %v1328, %v1559
    %v1600 = vmul.f32 %v1330, %v1560
    %v1601 = vmul.f32 %v1332, %v1559
    %v1602 = vmul.f32 %v1334, %v1560
    %v1603 = vmul.f32 %v1336, %v1559
    %v1604 = vmul.f32 %v1338, %v1560
    %v1605 = vmul.f32 %v1340, %v1559
    %v1606 = vmul.f32 %v1342, %v1560
    %v1607 = vmul.f32 %v1344, %v1561
    %v1608 = vmul.f32 %v1346, %v1562
    %v1609 = vmul.f32 %v1348, %v1561
    %v1610 = vmul.f32 %v1350, %v1562
    %v1611 = vmul.f32 %v1352, %v1561
    %v1612 = vmul.f32 %v1354, %v1562
    %v1613 = vmul.f32 %v1356, %v1561
    %v1614 = vmul.f32 %v1358, %v1562
    %v1615 = vmul.f32 %v1360, %v1563
    %v1616 = vmul.f32 %v1362, %v1564
    %v1617 = vmul.f32 %v1364, %v1563
    %v1618 = vmul.f32 %v1366, %v1564
    %v1619 = vmul.f32 %v1368, %v1563
    %v1620 = vmul.f32 %v1370, %v1564
    %v1621 = vmul.f32 %v1372, %v1563
    %v1622 = vmul.f32 %v1374, %v1564
    %v1623 = vmul.f32 %v1376, %v1565
    %v1624 = vmul.f32 %v1378, %v1566
    %v1625 = vmul.f32 %v1380, %v1565
    %v1626 = vmul.f32 %v1382, %v1566
    %v1627 = vmul.f32 %v1384, %v1565
    %v1628 = vmul.f32 %v1386, %v1566
    %v1629 = vmul.f32 %v1388, %v1565
    %v1630 = vmul.f32 %v1390, %v1566
    %v1631 = vmax.f32 %v673, %v675
    %1632 = vmax.xlane.f32.xlu0 %v1631
    %v1633 = vpop.xlane.xlu0 %1632
    %v1634 = vmax.f32 %v679, %v681
    %1635 = vmax.xlane.f32.xlu0 %v1634
    %v1636 = vpop.xlane.xlu0 %1635
    %v1637 = vmax.f32 %v685, %v687
    %1638 = vmax.xlane.f32.xlu0 %v1637
    %v1639 = vpop.xlane.xlu0 %1638
    %v1640 = vmax.f32 %v691, %v693
    %1641 = vmax.xlane.f32.xlu0 %v1640
    %v1642 = vpop.xlane.xlu0 %1641
    %v1643 = vmax.f32 %v697, %v699
    %1644 = vmax.xlane.f32.xlu0 %v1643
    %v1645 = vpop.xlane.xlu0 %1644
    %v1646 = vmax.f32 %v703, %v705
    %1647 = vmax.xlane.f32.xlu0 %v1646
    %v1648 = vpop.xlane.xlu0 %1647
    %v1649 = vmax.f32 %v709, %v711
    %1650 = vmax.xlane.f32.xlu0 %v1649
    %v1651 = vpop.xlane.xlu0 %1650
    %v1652 = vmax.f32 %v715, %v717
    %1653 = vmax.xlane.f32.xlu0 %v1652
    %v1654 = vpop.xlane.xlu0 %1653
    %v1655 = vmax.f32 %v721, %v723
    %1656 = vmax.xlane.f32.xlu0 %v1655
    %v1657 = vpop.xlane.xlu0 %1656
    %v1658 = vmax.f32 %v727, %v729
    %1659 = vmax.xlane.f32.xlu0 %v1658
    %v1660 = vpop.xlane.xlu0 %1659
    %v1661 = vmax.f32 %v733, %v735
    %1662 = vmax.xlane.f32.xlu0 %v1661
    %v1663 = vpop.xlane.xlu0 %1662
    %v1664 = vmax.f32 %v739, %v741
    %1665 = vmax.xlane.f32.xlu0 %v1664
    %v1666 = vpop.xlane.xlu0 %1665
    %v1667 = vmax.f32 %v745, %v747
    %1668 = vmax.xlane.f32.xlu0 %v1667
    %v1669 = vpop.xlane.xlu0 %1668
    %v1670 = vmax.f32 %v751, %v753
    %1671 = vmax.xlane.f32.xlu0 %v1670
    %v1672 = vpop.xlane.xlu0 %1671
    %v1673 = vmax.f32 %v757, %v759
    %1674 = vmax.xlane.f32.xlu0 %v1673
    %v1675 = vpop.xlane.xlu0 %1674
    %v1676 = vmax.f32 %v763, %v765
    %1677 = vmax.xlane.f32.xlu0 %v1676
    %v1678 = vpop.xlane.xlu0 %1677
    %v1679 = vmax.f32 %v769, %v771
    %1680 = vmax.xlane.f32.xlu0 %v1679
    %v1681 = vpop.xlane.xlu0 %1680
    %v1682 = vmax.f32 %v775, %v777
    %1683 = vmax.xlane.f32.xlu0 %v1682
    %v1684 = vpop.xlane.xlu0 %1683
    %v1685 = vmax.f32 %v781, %v783
    %1686 = vmax.xlane.f32.xlu0 %v1685
    %v1687 = vpop.xlane.xlu0 %1686
    %v1688 = vmax.f32 %v787, %v789
    %1689 = vmax.xlane.f32.xlu0 %v1688
    %v1690 = vpop.xlane.xlu0 %1689
    %v1691 = vmax.f32 %v793, %v795
    %1692 = vmax.xlane.f32.xlu0 %v1691
    %v1693 = vpop.xlane.xlu0 %1692
    %v1694 = vmax.f32 %v799, %v801
    %1695 = vmax.xlane.f32.xlu0 %v1694
    %v1696 = vpop.xlane.xlu0 %1695
    %v1697 = vmax.f32 %v805, %v807
    %1698 = vmax.xlane.f32.xlu0 %v1697
    %v1699 = vpop.xlane.xlu0 %1698
    %v1700 = vmax.f32 %v811, %v813
    %1701 = vmax.xlane.f32.xlu0 %v1700
    %v1702 = vpop.xlane.xlu0 %1701
    %v1703 = vmax.f32 %v817, %v819
    %1704 = vmax.xlane.f32.xlu0 %v1703
    %v1705 = vpop.xlane.xlu0 %1704
    %v1706 = vmax.f32 %v823, %v825
    %1707 = vmax.xlane.f32.xlu0 %v1706
    %v1708 = vpop.xlane.xlu0 %1707
    %v1709 = vmax.f32 %v829, %v831
    %1710 = vmax.xlane.f32.xlu0 %v1709
    %v1711 = vpop.xlane.xlu0 %1710
    %v1712 = vmax.f32 %v835, %v837
    %1713 = vmax.xlane.f32.xlu0 %v1712
    %v1714 = vpop.xlane.xlu0 %1713
    %v1715 = vmax.f32 %v841, %v843
    %1716 = vmax.xlane.f32.xlu0 %v1715
    %v1717 = vpop.xlane.xlu0 %1716
    %v1718 = vmax.f32 %v847, %v849
    %1719 = vmax.xlane.f32.xlu0 %v1718
    %v1720 = vpop.xlane.xlu0 %1719
    %v1721 = vmax.f32 %v853, %v855
    %1722 = vmax.xlane.f32.xlu0 %v1721
    %v1723 = vpop.xlane.xlu0 %1722
    %v1724 = vmax.f32 %v859, %v861
    %1725 = vmax.xlane.f32.xlu0 %v1724
    %v1726 = vpop.xlane.xlu0 %1725
    %v1727 = vsub.f32 %v673, %v1633
    %v1728 = vsub.f32 %v675, %v1633
    %v1729 = vsub.f32 %v679, %v1636
    %v1730 = vsub.f32 %v681, %v1636
    %v1731 = vsub.f32 %v685, %v1639
    %v1732 = vsub.f32 %v687, %v1639
    %v1733 = vsub.f32 %v691, %v1642
    %v1734 = vsub.f32 %v693, %v1642
    %v1735 = vsub.f32 %v697, %v1645
    %v1736 = vsub.f32 %v699, %v1645
    %v1737 = vsub.f32 %v703, %v1648
    %v1738 = vsub.f32 %v705, %v1648
    %v1739 = vsub.f32 %v709, %v1651
    %v1740 = vsub.f32 %v711, %v1651
    %v1741 = vsub.f32 %v715, %v1654
    %v1742 = vsub.f32 %v717, %v1654
    %v1743 = vsub.f32 %v721, %v1657
    %v1744 = vsub.f32 %v723, %v1657
    %v1745 = vsub.f32 %v727, %v1660
    %v1746 = vsub.f32 %v729, %v1660
    %v1747 = vsub.f32 %v733, %v1663
    %v1748 = vsub.f32 %v735, %v1663
    %v1749 = vsub.f32 %v739, %v1666
    %v1750 = vsub.f32 %v741, %v1666
    %v1751 = vsub.f32 %v745, %v1669
    %v1752 = vsub.f32 %v747, %v1669
    %v1753 = vsub.f32 %v751, %v1672
    %v1754 = vsub.f32 %v753, %v1672
    %v1755 = vsub.f32 %v757, %v1675
    %v1756 = vsub.f32 %v759, %v1675
    %v1757 = vsub.f32 %v763, %v1678
    %v1758 = vsub.f32 %v765, %v1678
    %v1759 = vsub.f32 %v769, %v1681
    %v1760 = vsub.f32 %v771, %v1681
    %v1761 = vsub.f32 %v775, %v1684
    %v1762 = vsub.f32 %v777, %v1684
    %v1763 = vsub.f32 %v781, %v1687
    %v1764 = vsub.f32 %v783, %v1687
    %v1765 = vsub.f32 %v787, %v1690
    %v1766 = vsub.f32 %v789, %v1690
    %v1767 = vsub.f32 %v793, %v1693
    %v1768 = vsub.f32 %v795, %v1693
    %v1769 = vsub.f32 %v799, %v1696
    %v1770 = vsub.f32 %v801, %v1696
    %v1771 = vsub.f32 %v805, %v1699
    %v1772 = vsub.f32 %v807, %v1699
    %v1773 = vsub.f32 %v811, %v1702
    %v1774 = vsub.f32 %v813, %v1702
    %v1775 = vsub.f32 %v817, %v1705
    %v1776 = vsub.f32 %v819, %v1705
    %v1777 = vsub.f32 %v823, %v1708
    %v1778 = vsub.f32 %v825, %v1708
    %v1779 = vsub.f32 %v829, %v1711
    %v1780 = vsub.f32 %v831, %v1711
    %v1781 = vsub.f32 %v835, %v1714
    %v1782 = vsub.f32 %v837, %v1714
    %v1783 = vsub.f32 %v841, %v1717
    %v1784 = vsub.f32 %v843, %v1717
    %v1785 = vsub.f32 %v847, %v1720
    %v1786 = vsub.f32 %v849, %v1720
    %v1787 = vsub.f32 %v853, %v1723
    %v1788 = vsub.f32 %v855, %v1723
    %v1789 = vsub.f32 %v859, %v1726
    %v1790 = vsub.f32 %v861, %v1726
    %v1791 = vmul.f32 %v1727, 1.442695
    %v1792 = vpow.pop %v1791
    %v1793 = vmul.f32 %v1728, 1.442695
    %v1794 = vpow.pop %v1793
    %v1795 = vmul.f32 %v1729, 1.442695
    %v1796 = vpow.pop %v1795
    %v1797 = vmul.f32 %v1730, 1.442695
    %v1798 = vpow.pop %v1797
    %v1799 = vmul.f32 %v1731, 1.442695
    %v1800 = vpow.pop %v1799
    %v1801 = vmul.f32 %v1732, 1.442695
    %v1802 = vpow.pop %v1801
    %v1803 = vmul.f32 %v1733, 1.442695
    %v1804 = vpow.pop %v1803
    %v1805 = vmul.f32 %v1734, 1.442695
    %v1806 = vpow.pop %v1805
    %v1807 = vmul.f32 %v1735, 1.442695
    %v1808 = vpow.pop %v1807
    %v1809 = vmul.f32 %v1736, 1.442695
    %v1810 = vpow.pop %v1809
    %v1811 = vmul.f32 %v1737, 1.442695
    %v1812 = vpow.pop %v1811
    %v1813 = vmul.f32 %v1738, 1.442695
    %v1814 = vpow.pop %v1813
    %v1815 = vmul.f32 %v1739, 1.442695
    %v1816 = vpow.pop %v1815
    %v1817 = vmul.f32 %v1740, 1.442695
    %v1818 = vpow.pop %v1817
    %v1819 = vmul.f32 %v1741, 1.442695
    %v1820 = vpow.pop %v1819
    %v1821 = vmul.f32 %v1742, 1.442695
    %v1822 = vpow.pop %v1821
    %v1823 = vmul.f32 %v1743, 1.442695
    %v1824 = vpow.pop %v1823
    %v1825 = vmul.f32 %v1744, 1.442695
    %v1826 = vpow.pop %v1825
    %v1827 = vmul.f32 %v1745, 1.442695
    %v1828 = vpow.pop %v1827
    %v1829 = vmul.f32 %v1746, 1.442695
    %v1830 = vpow.pop %v1829
    %v1831 = vmul.f32 %v1747, 1.442695
    %v1832 = vpow.pop %v1831
    %v1833 = vmul.f32 %v1748, 1.442695
    %v1834 = vpow.pop %v1833
    %v1835 = vmul.f32 %v1749, 1.442695
    %v1836 = vpow.pop %v1835
    %v1837 = vmul.f32 %v1750, 1.442695
    %v1838 = vpow.pop %v1837
    %v1839 = vmul.f32 %v1751, 1.442695
    %v1840 = vpow.pop %v1839
    %v1841 = vmul.f32 %v1752, 1.442695
    %v1842 = vpow.pop %v1841
    %v1843 = vmul.f32 %v1753, 1.442695
    %v1844 = vpow.pop %v1843
    %v1845 = vmul.f32 %v1754, 1.442695
    %v1846 = vpow.pop %v1845
    %v1847 = vmul.f32 %v1755, 1.442695
    %v1848 = vpow.pop %v1847
    %v1849 = vmul.f32 %v1756, 1.442695
    %v1850 = vpow.pop %v1849
    %v1851 = vmul.f32 %v1757, 1.442695
    %v1852 = vpow.pop %v1851
    %v1853 = vmul.f32 %v1758, 1.442695
    %v1854 = vpow.pop %v1853
    %v1855 = vmul.f32 %v1759, 1.442695
    %v1856 = vpow.pop %v1855
    %v1857 = vmul.f32 %v1760, 1.442695
    %v1858 = vpow.pop %v1857
    %v1859 = vmul.f32 %v1761, 1.442695
    %v1860 = vpow.pop %v1859
    %v1861 = vmul.f32 %v1762, 1.442695
    %v1862 = vpow.pop %v1861
    %v1863 = vmul.f32 %v1763, 1.442695
    %v1864 = vpow.pop %v1863
    %v1865 = vmul.f32 %v1764, 1.442695
    %v1866 = vpow.pop %v1865
    %v1867 = vmul.f32 %v1765, 1.442695
    %v1868 = vpow.pop %v1867
    %v1869 = vmul.f32 %v1766, 1.442695
    %v1870 = vpow.pop %v1869
    %v1871 = vmul.f32 %v1767, 1.442695
    %v1872 = vpow.pop %v1871
    %v1873 = vmul.f32 %v1768, 1.442695
    %v1874 = vpow.pop %v1873
    %v1875 = vmul.f32 %v1769, 1.442695
    %v1876 = vpow.pop %v1875
    %v1877 = vmul.f32 %v1770, 1.442695
    %v1878 = vpow.pop %v1877
    %v1879 = vmul.f32 %v1771, 1.442695
    %v1880 = vpow.pop %v1879
    %v1881 = vmul.f32 %v1772, 1.442695
    %v1882 = vpow.pop %v1881
    %v1883 = vmul.f32 %v1773, 1.442695
    %v1884 = vpow.pop %v1883
    %v1885 = vmul.f32 %v1774, 1.442695
    %v1886 = vpow.pop %v1885
    %v1887 = vmul.f32 %v1775, 1.442695
    %v1888 = vpow.pop %v1887
    %v1889 = vmul.f32 %v1776, 1.442695
    %v1890 = vpow.pop %v1889
    %v1891 = vmul.f32 %v1777, 1.442695
    %v1892 = vpow.pop %v1891
    %v1893 = vmul.f32 %v1778, 1.442695
    %v1894 = vpow.pop %v1893
    %v1895 = vmul.f32 %v1779, 1.442695
    %v1896 = vpow.pop %v1895
    %v1897 = vmul.f32 %v1780, 1.442695
    %v1898 = vpow.pop %v1897
    %v1899 = vmul.f32 %v1781, 1.442695
    %v1900 = vpow.pop %v1899
    %v1901 = vmul.f32 %v1782, 1.442695
    %v1902 = vpow.pop %v1901
    %v1903 = vmul.f32 %v1783, 1.442695
    %v1904 = vpow.pop %v1903
    %v1905 = vmul.f32 %v1784, 1.442695
    %v1906 = vpow.pop %v1905
    %v1907 = vmul.f32 %v1785, 1.442695
    %v1908 = vpow.pop %v1907
    %v1909 = vmul.f32 %v1786, 1.442695
    %v1910 = vpow.pop %v1909
    %v1911 = vmul.f32 %v1787, 1.442695
    %v1912 = vpow.pop %v1911
    %v1913 = vmul.f32 %v1788, 1.442695
    %v1914 = vpow.pop %v1913
    %v1915 = vmul.f32 %v1789, 1.442695
    %v1916 = vpow.pop %v1915
    %v1917 = vmul.f32 %v1790, 1.442695
    %v1918 = vpow.pop %v1917
    %1919 = vmatprep.subr.mxu0 %v1794
    %1920 = vmatpush1.xpose.msra.mxu0 %v1792
    %1921 = vmatprep.subr.mxu0 %v1798
    %1922 = vmatpush1.xpose.msra.mxu0 %v1796
    %1923 = vmatprep.subr.mxu0 %v1802
    %1924 = vmatpush1.xpose.msra.mxu0 %v1800
    %1925 = vmatprep.subr.mxu0 %v1806
    %1926 = vmatpush1.xpose.msra.mxu0 %v1804
    %1927 = vmatprep.subr.mxu0 %v1810
    %1928 = vmatpush1.xpose.msra.mxu0 %v1808
    %1929 = vmatprep.subr.mxu0 %v1814
    %1930 = vmatpush1.xpose.msra.mxu0 %v1812
    %1931 = vmatprep.subr.mxu0 %v1818
    %1932 = vmatpush1.xpose.msra.mxu0 %v1816
    %1933 = vmatprep.subr.mxu0 %v1822
    %1934 = vmatpush1.xpose.msra.mxu0 %v1820
    %1935 = vmatprep.subr.mxu0 %v1826
    %1936 = vmatpush1.xpose.msra.mxu0 %v1824
    %1937 = vmatprep.subr.mxu0 %v1830
    %1938 = vmatpush1.xpose.msra.mxu0 %v1828
    %1939 = vmatprep.subr.mxu0 %v1834
    %1940 = vmatpush1.xpose.msra.mxu0 %v1832
    %1941 = vmatprep.subr.mxu0 %v1838
    %1942 = vmatpush1.xpose.msra.mxu0 %v1836
    %1943 = vmatprep.subr.mxu0 %v1842
    %1944 = vmatpush1.xpose.msra.mxu0 %v1840
    %1945 = vmatprep.subr.mxu0 %v1846
    %1946 = vmatpush1.xpose.msra.mxu0 %v1844
    %1947 = vmatprep.subr.mxu0 %v1850
    %1948 = vmatpush1.xpose.msra.mxu0 %v1848
    %1949 = vmatprep.subr.mxu0 %v1854
    %1950 = vmatpush1.xpose.msra.mxu0 %v1852
    %1951 = vmatprep.subr.mxu0 %v1858
    %1952 = vmatpush1.xpose.msra.mxu0 %v1856
    %1953 = vmatprep.subr.mxu0 %v1862
    %1954 = vmatpush1.xpose.msra.mxu0 %v1860
    %1955 = vmatprep.subr.mxu0 %v1866
    %1956 = vmatpush1.xpose.msra.mxu0 %v1864
    %1957 = vmatprep.subr.mxu0 %v1870
    %1958 = vmatpush1.xpose.msra.mxu0 %v1868
    %1959 = vmatprep.subr.mxu0 %v1874
    %1960 = vmatpush1.xpose.msra.mxu0 %v1872
    %1961 = vmatprep.subr.mxu0 %v1878
    %1962 = vmatpush1.xpose.msra.mxu0 %v1876
    %1963 = vmatprep.subr.mxu0 %v1882
    %1964 = vmatpush1.xpose.msra.mxu0 %v1880
    %1965 = vmatprep.subr.mxu0 %v1886
    %1966 = vmatpush1.xpose.msra.mxu0 %v1884
    %1967 = vmatprep.subr.mxu0 %v1890
    %1968 = vmatpush1.xpose.msra.mxu0 %v1888
    %1969 = vmatprep.subr.mxu0 %v1894
    %1970 = vmatpush1.xpose.msra.mxu0 %v1892
    %1971 = vmatprep.subr.mxu0 %v1898
    %1972 = vmatpush1.xpose.msra.mxu0 %v1896
    %1973 = vmatprep.subr.mxu0 %v1902
    %1974 = vmatpush1.xpose.msra.mxu0 %v1900
    %1975 = vmatprep.subr.mxu0 %v1906
    %1976 = vmatpush1.xpose.msra.mxu0 %v1904
    %1977 = vmatprep.subr.mxu0 %v1910
    %1978 = vmatpush1.xpose.msra.mxu0 %v1908
    %1979 = vmatprep.subr.mxu0 %v1914
    %1980 = vmatpush1.xpose.msra.mxu0 %v1912
    %1981 = vmatprep.subr.mxu0 %v1918
    %1982 = vmatpush1.xpose.msra.mxu0 %v1916
    %1983 = vmatprep.mubr.f32.mxu0 1.0
    %1984 = vmatmul.mubr.f32.gmra.mrb[0].mxu0 1.0
    %v1985 = vpop.f32.mrb[0].mxu0
    %v1986 = vadd.f32 0.0, %v1985
    %v1987 = vpop.f32.mrb[0].mxu0
    %v1988 = vadd.f32 0.0, %v1987
    %1989 = vdwg.mxu0
    %v1990 = vrcp.pop %v1986
    %v1991 = vrcp.pop %v1988
    %v1992 = vpack.c.bf16 %v871, %v865
    %v1993 = vpack.c.bf16 %v873, %v867
    %v1994 = vpack.c.bf16 %v883, %v877
    %v1995 = vpack.c.bf16 %v885, %v879
    %v1996 = vpack.c.bf16 %v895, %v889
    %v1997 = vpack.c.bf16 %v897, %v891
    %v1998 = vpack.c.bf16 %v907, %v901
    %v1999 = vpack.c.bf16 %v909, %v903
    %v2000 = vpack.c.bf16 %v919, %v913
    %v2001 = vpack.c.bf16 %v921, %v915
    %v2002 = vpack.c.bf16 %v931, %v925
    %v2003 = vpack.c.bf16 %v933, %v927
    %v2004 = vpack.c.bf16 %v943, %v937
    %v2005 = vpack.c.bf16 %v945, %v939
    %v2006 = vpack.c.bf16 %v955, %v949
    %v2007 = vpack.c.bf16 %v957, %v951
    %v2008 = vpack.c.bf16 %v967, %v961
    %v2009 = vpack.c.bf16 %v969, %v963
    %v2010 = vpack.c.bf16 %v979, %v973
    %v2011 = vpack.c.bf16 %v981, %v975
    %v2012 = vpack.c.bf16 %v991, %v985
    %v2013 = vpack.c.bf16 %v993, %v987
    %v2014 = vpack.c.bf16 %v1003, %v997
    %v2015 = vpack.c.bf16 %v1005, %v999
    %v2016 = vpack.c.bf16 %v1015, %v1009
    %v2017 = vpack.c.bf16 %v1017, %v1011
    %v2018 = vpack.c.bf16 %v1027, %v1021
    %v2019 = vpack.c.bf16 %v1029, %v1023
    %v2020 = vpack.c.bf16 %v1039, %v1033
    %v2021 = vpack.c.bf16 %v1041, %v1035
    %v2022 = vpack.c.bf16 %v1051, %v1045
    %v2023 = vpack.c.bf16 %v1053, %v1047
    %v2024 = vpack.c.bf16 %v1796, %v1792
    %v2025 = vpack.c.bf16 %v1798, %v1794
    %v2026 = vpack.c.bf16 %v1804, %v1800
    %v2027 = vpack.c.bf16 %v1806, %v1802
    %v2028 = vpack.c.bf16 %v1812, %v1808
    %v2029 = vpack.c.bf16 %v1814, %v1810
    %v2030 = vpack.c.bf16 %v1820, %v1816
    %v2031 = vpack.c.bf16 %v1822, %v1818
    %v2032 = vpack.c.bf16 %v1828, %v1824
    %v2033 = vpack.c.bf16 %v1830, %v1826
    %v2034 = vpack.c.bf16 %v1836, %v1832
    %v2035 = vpack.c.bf16 %v1838, %v1834
    %v2036 = vpack.c.bf16 %v1844, %v1840
    %v2037 = vpack.c.bf16 %v1846, %v1842
    %v2038 = vpack.c.bf16 %v1852, %v1848
    %v2039 = vpack.c.bf16 %v1854, %v1850
    %v2040 = vpack.c.bf16 %v1860, %v1856
    %v2041 = vpack.c.bf16 %v1862, %v1858
    %v2042 = vpack.c.bf16 %v1868, %v1864
    %v2043 = vpack.c.bf16 %v1870, %v1866
    %v2044 = vpack.c.bf16 %v1876, %v1872
    %v2045 = vpack.c.bf16 %v1878, %v1874
    %v2046 = vpack.c.bf16 %v1884, %v1880
    %v2047 = vpack.c.bf16 %v1886, %v1882
    %v2048 = vpack.c.bf16 %v1892, %v1888
    %v2049 = vpack.c.bf16 %v1894, %v1890
    %v2050 = vpack.c.bf16 %v1900, %v1896
    %v2051 = vpack.c.bf16 %v1902, %v1898
    %v2052 = vpack.c.bf16 %v1908, %v1904
    %v2053 = vpack.c.bf16 %v1910, %v1906
    %v2054 = vpack.c.bf16 %v1916, %v1912
    %v2055 = vpack.c.bf16 %v1918, %v1914
    %2056 = vmatprep.subr.bf16.mxu0 %v2025
    %2057 = vmatpush1.bf16.xpose.msra.mxu0 %v2024
    %2058 = vmatprep.subr.bf16.mxu0 %v2027
    %2059 = vmatpush1.bf16.xpose.msra.mxu0 %v2026
    %2060 = vmatprep.subr.bf16.mxu0 %v2029
    %2061 = vmatpush1.bf16.xpose.msra.mxu0 %v2028
    %2062 = vmatprep.subr.bf16.mxu0 %v2031
    %2063 = vmatpush1.bf16.xpose.msra.mxu0 %v2030
    %2064 = vmatprep.subr.bf16.mxu0 %v2033
    %2065 = vmatpush1.bf16.xpose.msra.mxu0 %v2032
    %2066 = vmatprep.subr.bf16.mxu0 %v2035
    %2067 = vmatpush1.bf16.xpose.msra.mxu0 %v2034
    %2068 = vmatprep.subr.bf16.mxu0 %v2037
    %2069 = vmatpush1.bf16.xpose.msra.mxu0 %v2036
    %2070 = vmatprep.subr.bf16.mxu0 %v2039
    %2071 = vmatpush1.bf16.xpose.msra.mxu0 %v2038
    %2072 = vmatprep.subr.bf16.mxu0 %v2041
    %2073 = vmatpush1.bf16.xpose.msra.mxu0 %v2040
    %2074 = vmatprep.subr.bf16.mxu0 %v2043
    %2075 = vmatpush1.bf16.xpose.msra.mxu0 %v2042
    %2076 = vmatprep.subr.bf16.mxu0 %v2045
    %2077 = vmatpush1.bf16.xpose.msra.mxu0 %v2044
    %2078 = vmatprep.subr.bf16.mxu0 %v2047
    %2079 = vmatpush1.bf16.xpose.msra.mxu0 %v2046
    %2080 = vmatprep.subr.bf16.mxu0 %v2049
    %2081 = vmatpush1.bf16.xpose.msra.mxu0 %v2048
    %2082 = vmatprep.subr.bf16.mxu0 %v2051
    %2083 = vmatpush1.bf16.xpose.msra.mxu0 %v2050
    %2084 = vmatprep.subr.bf16.mxu0 %v2053
    %2085 = vmatpush1.bf16.xpose.msra.mxu0 %v2052
    %2086 = vmatprep.subr.bf16.mxu0 %v2055
    %2087 = vmatpush1.bf16.xpose.msra.mxu0 %v2054
    %2088 = vmatprep.mubr.bf16.mxu0 %v1993
    %2089 = vmatmul.mubr.bf16.gmra.mrb[0].mxu0 %v1992
    %v2090 = vpop.f32.mrb[0].mxu0
    %v2091 = vadd.f32 0.0, %v2090
    %v2092 = vpop.f32.mrb[0].mxu0
    %v2093 = vadd.f32 0.0, %v2092
    %v2094 = vpop.f32.mrb[0].mxu0
    %v2095 = vadd.f32 0.0, %v2094
    %v2096 = vpop.f32.mrb[0].mxu0
    %v2097 = vadd.f32 0.0, %v2096
    %2098 = vmatprep.mubr.bf16.mxu0 %v1995
    %2099 = vmatmul.mubr.bf16.gmra.mrb[0].mxu0 %v1994
    %v2100 = vpop.f32.mrb[0].mxu0
    %v2101 = vadd.f32 0.0, %v2100
    %v2102 = vpop.f32.mrb[0].mxu0
    %v2103 = vadd.f32 0.0, %v2102
    %v2104 = vpop.f32.mrb[0].mxu0
    %v2105 = vadd.f32 0.0, %v2104
    %v2106 = vpop.f32.mrb[0].mxu0
    %v2107 = vadd.f32 0.0, %v2106
    %2108 = vmatprep.mubr.bf16.mxu0 %v1997
    %2109 = vmatmul.mubr.bf16.gmra.mrb[0].mxu0 %v1996
    %v2110 = vpop.f32.mrb[0].mxu0
    %v2111 = vadd.f32 0.0, %v2110
    %v2112 = vpop.f32.mrb[0].mxu0
    %v2113 = vadd.f32 0.0, %v2112
    %v2114 = vpop.f32.mrb[0].mxu0
    %v2115 = vadd.f32 0.0, %v2114
    %v2116 = vpop.f32.mrb[0].mxu0
    %v2117 = vadd.f32 0.0, %v2116
    %2118 = vmatprep.mubr.bf16.mxu0 %v1999
    %2119 = vmatmul.mubr.bf16.gmra.mrb[0].mxu0 %v1998
    %v2120 = vpop.f32.mrb[0].mxu0
    %v2121 = vadd.f32 0.0, %v2120
    %v2122 = vpop.f32.mrb[0].mxu0
    %v2123 = vadd.f32 0.0, %v2122
    %v2124 = vpop.f32.mrb[0].mxu0
    %v2125 = vadd.f32 0.0, %v2124
    %v2126 = vpop.f32.mrb[0].mxu0
    %v2127 = vadd.f32 0.0, %v2126
    %2128 = vmatprep.mubr.bf16.mxu0 %v2001
    %2129 = vmatmul.mubr.bf16.gmra.mrb[0].mxu0 %v2000
    %v2130 = vpop.f32.mrb[0].mxu0
    %v2131 = vadd.f32 0.0, %v2130
    %v2132 = vpop.f32.mrb[0].mxu0
    %v2133 = vadd.f32 0.0, %v2132
    %v2134 = vpop.f32.mrb[0].mxu0
    %v2135 = vadd.f32 0.0, %v2134
    %v2136 = vpop.f32.mrb[0].mxu0
    %v2137 = vadd.f32 0.0, %v2136
    %2138 = vmatprep.mubr.bf16.mxu0 %v2003
    %2139 = vmatmul.mubr.bf16.gmra.mrb[0].mxu0 %v2002
    %v2140 = vpop.f32.mrb[0].mxu0
    %v2141 = vadd.f32 0.0, %v2140
    %v2142 = vpop.f32.mrb[0].mxu0
    %v2143 = vadd.f32 0.0, %v2142
    %v2144 = vpop.f32.mrb[0].mxu0
    %v2145 = vadd.f32 0.0, %v2144
    %v2146 = vpop.f32.mrb[0].mxu0
    %v2147 = vadd.f32 0.0, %v2146
    %2148 = vmatprep.mubr.bf16.mxu0 %v2005
    %2149 = vmatmul.mubr.bf16.gmra.mrb[0].mxu0 %v2004
    %v2150 = vpop.f32.mrb[0].mxu0
    %v2151 = vadd.f32 0.0, %v2150
    %v2152 = vpop.f32.mrb[0].mxu0
    %v2153 = vadd.f32 0.0, %v2152
    %v2154 = vpop.f32.mrb[0].mxu0
    %v2155 = vadd.f32 0.0, %v2154
    %v2156 = vpop.f32.mrb[0].mxu0
    %v2157 = vadd.f32 0.0, %v2156
    %2158 = vmatprep.mubr.bf16.mxu0 %v2007
    %2159 = vmatmul.mubr.bf16.gmra.mrb[0].mxu0 %v2006
    %v2160 = vpop.f32.mrb[0].mxu0
    %v2161 = vadd.f32 0.0, %v2160
    %v2162 = vpop.f32.mrb[0].mxu0
    %v2163 = vadd.f32 0.0, %v2162
    %v2164 = vpop.f32.mrb[0].mxu0
    %v2165 = vadd.f32 0.0, %v2164
    %v2166 = vpop.f32.mrb[0].mxu0
    %v2167 = vadd.f32 0.0, %v2166
    %2168 = vmatprep.mubr.bf16.mxu0 %v2009
    %2169 = vmatmul.mubr.bf16.gmra.mrb[0].mxu0 %v2008
    %v2170 = vpop.f32.mrb[0].mxu0
    %v2171 = vadd.f32 0.0, %v2170
    %v2172 = vpop.f32.mrb[0].mxu0
    %v2173 = vadd.f32 0.0, %v2172
    %v2174 = vpop.f32.mrb[0].mxu0
    %v2175 = vadd.f32 0.0, %v2174
    %v2176 = vpop.f32.mrb[0].mxu0
    %v2177 = vadd.f32 0.0, %v2176
    %2178 = vmatprep.mubr.bf16.mxu0 %v2011
    %2179 = vmatmul.mubr.bf16.gmra.mrb[0].mxu0 %v2010
    %v2180 = vpop.f32.mrb[0].mxu0
    %v2181 = vadd.f32 0.0, %v2180
    %v2182 = vpop.f32.mrb[0].mxu0
    %v2183 = vadd.f32 0.0, %v2182
    %v2184 = vpop.f32.mrb[0].mxu0
    %v2185 = vadd.f32 0.0, %v2184
    %v2186 = vpop.f32.mrb[0].mxu0
    %v2187 = vadd.f32 0.0, %v2186
    %2188 = vmatprep.mubr.bf16.mxu0 %v2013
    %2189 = vmatmul.mubr.bf16.gmra.mrb[0].mxu0 %v2012
    %v2190 = vpop.f32.mrb[0].mxu0
    %v2191 = vadd.f32 0.0, %v2190
    %v2192 = vpop.f32.mrb[0].mxu0
    %v2193 = vadd.f32 0.0, %v2192
    %v2194 = vpop.f32.mrb[0].mxu0
    %v2195 = vadd.f32 0.0, %v2194
    %v2196 = vpop.f32.mrb[0].mxu0
    %v2197 = vadd.f32 0.0, %v2196
    %2198 = vmatprep.mubr.bf16.mxu0 %v2015
    %2199 = vmatmul.mubr.bf16.gmra.mrb[0].mxu0 %v2014
    %v2200 = vpop.f32.mrb[0].mxu0
    %v2201 = vadd.f32 0.0, %v2200
    %v2202 = vpop.f32.mrb[0].mxu0
    %v2203 = vadd.f32 0.0, %v2202
    %v2204 = vpop.f32.mrb[0].mxu0
    %v2205 = vadd.f32 0.0, %v2204
    %v2206 = vpop.f32.mrb[0].mxu0
    %v2207 = vadd.f32 0.0, %v2206
    %2208 = vmatprep.mubr.bf16.mxu0 %v2017
    %2209 = vmatmul.mubr.bf16.gmra.mrb[0].mxu0 %v2016
    %v2210 = vpop.f32.mrb[0].mxu0
    %v2211 = vadd.f32 0.0, %v2210
    %v2212 = vpop.f32.mrb[0].mxu0
    %v2213 = vadd.f32 0.0, %v2212
    %v2214 = vpop.f32.mrb[0].mxu0
    %v2215 = vadd.f32 0.0, %v2214
    %v2216 = vpop.f32.mrb[0].mxu0
    %v2217 = vadd.f32 0.0, %v2216
    %2218 = vmatprep.mubr.bf16.mxu0 %v2019
    %2219 = vmatmul.mubr.bf16.gmra.mrb[0].mxu0 %v2018
    %v2220 = vpop.f32.mrb[0].mxu0
    %v2221 = vadd.f32 0.0, %v2220
    %v2222 = vpop.f32.mrb[0].mxu0
    %v2223 = vadd.f32 0.0, %v2222
    %v2224 = vpop.f32.mrb[0].mxu0
    %v2225 = vadd.f32 0.0, %v2224
    %v2226 = vpop.f32.mrb[0].mxu0
    %v2227 = vadd.f32 0.0, %v2226
    %2228 = vmatprep.mubr.bf16.mxu0 %v2021
    %2229 = vmatmul.mubr.bf16.gmra.mrb[0].mxu0 %v2020
    %v2230 = vpop.f32.mrb[0].mxu0
    %v2231 = vadd.f32 0.0, %v2230
    %v2232 = vpop.f32.mrb[0].mxu0
    %v2233 = vadd.f32 0.0, %v2232
    %v2234 = vpop.f32.mrb[0].mxu0
    %v2235 = vadd.f32 0.0, %v2234
    %v2236 = vpop.f32.mrb[0].mxu0
    %v2237 = vadd.f32 0.0, %v2236
    %2238 = vmatprep.mubr.bf16.mxu0 %v2023
    %2239 = vmatmul.mubr.bf16.gmra.mrb[0].mxu0 %v2022
    %v2240 = vpop.f32.mrb[0].mxu0
    %v2241 = vadd.f32 0.0, %v2240
    %v2242 = vpop.f32.mrb[0].mxu0
    %v2243 = vadd.f32 0.0, %v2242
    %v2244 = vpop.f32.mrb[0].mxu0
    %v2245 = vadd.f32 0.0, %v2244
    %v2246 = vpop.f32.mrb[0].mxu0
    %v2247 = vadd.f32 0.0, %v2246
    %2248 = vdwg.mxu0
    %v2249 = vld [vmem:[%s6] sm:$0xff]
    %v2250 = vld [vmem:[%s6 + $0x8] sm:$0xff]
    %v2251 = vld [vmem:[%s6 + $0x10] sm:$0xff]
    %v2252 = vld [vmem:[%s6 + $0x18] sm:$0xff]
    %v2253 = vld [vmem:[%s6 + $0x20] sm:$0xff]
    %v2254 = vld [vmem:[%s6 + $0x28] sm:$0xff]
    %v2255 = vld [vmem:[%s6 + $0x30] sm:$0xff]
    %v2256 = vld [vmem:[%s6 + $0x38] sm:$0xff]
    %v2257 = vld [vmem:[%s6 + $0x40] sm:$0xff]
    %v2258 = vld [vmem:[%s6 + $0x48] sm:$0xff]
    %v2259 = vld [vmem:[%s6 + $0x50] sm:$0xff]
    %v2260 = vld [vmem:[%s6 + $0x58] sm:$0xff]
    %v2261 = vld [vmem:[%s6 + $0x60] sm:$0xff]
    %v2262 = vld [vmem:[%s6 + $0x68] sm:$0xff]
    %v2263 = vld [vmem:[%s6 + $0x70] sm:$0xff]
    %v2264 = vld [vmem:[%s6 + $0x78] sm:$0xff]
    %v2265 = vld [vmem:[%s6 + $0x80] sm:$0xff]
    %v2266 = vld [vmem:[%s6 + $0x88] sm:$0xff]
    %v2267 = vld [vmem:[%s6 + $0x90] sm:$0xff]
    %v2268 = vld [vmem:[%s6 + $0x98] sm:$0xff]
    %v2269 = vld [vmem:[%s6 + $0xa0] sm:$0xff]
    %v2270 = vld [vmem:[%s6 + $0xa8] sm:$0xff]
    %v2271 = vld [vmem:[%s6 + $0xb0] sm:$0xff]
    %v2272 = vld [vmem:[%s6 + $0xb8] sm:$0xff]
    %v2273 = vld [vmem:[%s6 + $0xc0] sm:$0xff]
    %v2274 = vld [vmem:[%s6 + $0xc8] sm:$0xff]
    %v2275 = vld [vmem:[%s6 + $0xd0] sm:$0xff]
    %v2276 = vld [vmem:[%s6 + $0xd8] sm:$0xff]
    %v2277 = vld [vmem:[%s6 + $0xe0] sm:$0xff]
    %v2278 = vld [vmem:[%s6 + $0xe8] sm:$0xff]
    %v2279 = vld [vmem:[%s6 + $0xf0] sm:$0xff]
    %v2280 = vld [vmem:[%s6 + $0xf8] sm:$0xff]
    %v2281 = vld [vmem:[%s6 + $0x100] sm:$0xff]
    %v2282 = vld [vmem:[%s6 + $0x108] sm:$0xff]
    %v2283 = vld [vmem:[%s6 + $0x110] sm:$0xff]
    %v2284 = vld [vmem:[%s6 + $0x118] sm:$0xff]
    %v2285 = vld [vmem:[%s6 + $0x120] sm:$0xff]
    %v2286 = vld [vmem:[%s6 + $0x128] sm:$0xff]
    %v2287 = vld [vmem:[%s6 + $0x130] sm:$0xff]
    %v2288 = vld [vmem:[%s6 + $0x138] sm:$0xff]
    %v2289 = vld [vmem:[%s6 + $0x140] sm:$0xff]
    %v2290 = vld [vmem:[%s6 + $0x148] sm:$0xff]
    %v2291 = vld [vmem:[%s6 + $0x150] sm:$0xff]
    %v2292 = vld [vmem:[%s6 + $0x158] sm:$0xff]
    %v2293 = vld [vmem:[%s6 + $0x160] sm:$0xff]
    %v2294 = vld [vmem:[%s6 + $0x168] sm:$0xff]
    %v2295 = vld [vmem:[%s6 + $0x170] sm:$0xff]
    %v2296 = vld [vmem:[%s6 + $0x178] sm:$0xff]
    %v2297 = vld [vmem:[%s6 + $0x180] sm:$0xff]
    %v2298 = vld [vmem:[%s6 + $0x188] sm:$0xff]
    %v2299 = vld [vmem:[%s6 + $0x190] sm:$0xff]
    %v2300 = vld [vmem:[%s6 + $0x198] sm:$0xff]
    %v2301 = vld [vmem:[%s6 + $0x1a0] sm:$0xff]
    %v2302 = vld [vmem:[%s6 + $0x1a8] sm:$0xff]
    %v2303 = vld [vmem:[%s6 + $0x1b0] sm:$0xff]
    %v2304 = vld [vmem:[%s6 + $0x1b8] sm:$0xff]
    %v2305 = vld [vmem:[%s6 + $0x1c0] sm:$0xff]
    %v2306 = vld [vmem:[%s6 + $0x1c8] sm:$0xff]
    %v2307 = vld [vmem:[%s6 + $0x1d0] sm:$0xff]
    %v2308 = vld [vmem:[%s6 + $0x1d8] sm:$0xff]
    %v2309 = vld [vmem:[%s6 + $0x1e0] sm:$0xff]
    %v2310 = vld [vmem:[%s6 + $0x1e8] sm:$0xff]
    %v2311 = vld [vmem:[%s6 + $0x1f0] sm:$0xff]
    %v2312 = vld [vmem:[%s6 + $0x1f8] sm:$0xff]
    %v2313 = vlaneseq
    %v2314 = vshrl.u32 %v2313, 7
    %v2315 = vsub.s32 0, %v2314
    %v2316 = vrot.slane %v1990, %v2315
    %v2317 = vlaneseq
    %v2318 = vshrl.u32 %v2317, 7
    %v2319 = vsub.s32 0, %v2318
    %v2320 = vrot.slane %v1991, %v2319
    %v2321 = vmul.f32 %v2249, %v2316
    %v2322 = vmul.f32 %v2250, %v2320
    %v2323 = vmul.f32 %v2251, %v2316
    %v2324 = vmul.f32 %v2252, %v2320
    %v2325 = vmul.f32 %v2253, %v2316
    %v2326 = vmul.f32 %v2254, %v2320
    %v2327 = vmul.f32 %v2255, %v2316
    %v2328 = vmul.f32 %v2256, %v2320
    %v2329 = vmul.f32 %v2257, %v2316
    %v2330 = vmul.f32 %v2258, %v2320
    %v2331 = vmul.f32 %v2259, %v2316
    %v2332 = vmul.f32 %v2260, %v2320
    %v2333 = vmul.f32 %v2261, %v2316
    %v2334 = vmul.f32 %v2262, %v2320
    %v2335 = vmul.f32 %v2263, %v2316
    %v2336 = vmul.f32 %v2264, %v2320
    %v2337 = vmul.f32 %v2265, %v2316
    %v2338 = vmul.f32 %v2266, %v2320
    %v2339 = vmul.f32 %v2267, %v2316
    %v2340 = vmul.f32 %v2268, %v2320
    %v2341 = vmul.f32 %v2269, %v2316
    %v2342 = vmul.f32 %v2270, %v2320
    %v2343 = vmul.f32 %v2271, %v2316
    %v2344 = vmul.f32 %v2272, %v2320
    %v2345 = vmul.f32 %v2273, %v2316
    %v2346 = vmul.f32 %v2274, %v2320
    %v2347 = vmul.f32 %v2275, %v2316
    %v2348 = vmul.f32 %v2276, %v2320
    %v2349 = vmul.f32 %v2277, %v2316
    %v2350 = vmul.f32 %v2278, %v2320
    %v2351 = vmul.f32 %v2279, %v2316
    %v2352 = vmul.f32 %v2280, %v2320
    %v2353 = vmul.f32 %v2281, %v2316
    %v2354 = vmul.f32 %v2282, %v2320
    %v2355 = vmul.f32 %v2283, %v2316
    %v2356 = vmul.f32 %v2284, %v2320
    %v2357 = vmul.f32 %v2285, %v2316
    %v2358 = vmul.f32 %v2286, %v2320
    %v2359 = vmul.f32 %v2287, %v2316
    %v2360 = vmul.f32 %v2288, %v2320
    %v2361 = vmul.f32 %v2289, %v2316
    %v2362 = vmul.f32 %v2290, %v2320
    %v2363 = vmul.f32 %v2291, %v2316
    %v2364 = vmul.f32 %v2292, %v2320
    %v2365 = vmul.f32 %v2293, %v2316
    %v2366 = vmul.f32 %v2294, %v2320
    %v2367 = vmul.f32 %v2295, %v2316
    %v2368 = vmul.f32 %v2296, %v2320
    %v2369 = vmul.f32 %v2297, %v2316
    %v2370 = vmul.f32 %v2298, %v2320
    %v2371 = vmul.f32 %v2299, %v2316
    %v2372 = vmul.f32 %v2300, %v2320
    %v2373 = vmul.f32 %v2301, %v2316
    %v2374 = vmul.f32 %v2302, %v2320
    %v2375 = vmul.f32 %v2303, %v2316
    %v2376 = vmul.f32 %v2304, %v2320
    %v2377 = vmul.f32 %v2305, %v2316
    %v2378 = vmul.f32 %v2306, %v2320
    %v2379 = vmul.f32 %v2307, %v2316
    %v2380 = vmul.f32 %v2308, %v2320
    %v2381 = vmul.f32 %v2309, %v2316
    %v2382 = vmul.f32 %v2310, %v2320
    %v2383 = vmul.f32 %v2311, %v2316
    %v2384 = vmul.f32 %v2312, %v2320
    %v2385 = vmul.f32 %v2091, %v2321
    %v2386 = vmul.f32 %v2093, %v2322
    %v2387 = vmul.f32 %v2095, %v2323
    %v2388 = vmul.f32 %v2097, %v2324
    %v2389 = vmul.f32 %v2101, %v2325
    %v2390 = vmul.f32 %v2103, %v2326
    %v2391 = vmul.f32 %v2105, %v2327
    %v2392 = vmul.f32 %v2107, %v2328
    %v2393 = vmul.f32 %v2111, %v2329
    %v2394 = vmul.f32 %v2113, %v2330
    %v2395 = vmul.f32 %v2115, %v2331
    %v2396 = vmul.f32 %v2117, %v2332
    %v2397 = vmul.f32 %v2121, %v2333
    %v2398 = vmul.f32 %v2123, %v2334
    %v2399 = vmul.f32 %v2125, %v2335
    %v2400 = vmul.f32 %v2127, %v2336
    %v2401 = vmul.f32 %v2131, %v2337
    %v2402 = vmul.f32 %v2133, %v2338
    %v2403 = vmul.f32 %v2135, %v2339
    %v2404 = vmul.f32 %v2137, %v2340
    %v2405 = vmul.f32 %v2141, %v2341
    %v2406 = vmul.f32 %v2143, %v2342
    %v2407 = vmul.f32 %v2145, %v2343
    %v2408 = vmul.f32 %v2147, %v2344
    %v2409 = vmul.f32 %v2151, %v2345
    %v2410 = vmul.f32 %v2153, %v2346
    %v2411 = vmul.f32 %v2155, %v2347
    %v2412 = vmul.f32 %v2157, %v2348
    %v2413 = vmul.f32 %v2161, %v2349
    %v2414 = vmul.f32 %v2163, %v2350
    %v2415 = vmul.f32 %v2165, %v2351
    %v2416 = vmul.f32 %v2167, %v2352
    %v2417 = vmul.f32 %v2171, %v2353
    %v2418 = vmul.f32 %v2173, %v2354
    %v2419 = vmul.f32 %v2175, %v2355
    %v2420 = vmul.f32 %v2177, %v2356
    %v2421 = vmul.f32 %v2181, %v2357
    %v2422 = vmul.f32 %v2183, %v2358
    %v2423 = vmul.f32 %v2185, %v2359
    %v2424 = vmul.f32 %v2187, %v2360
    %v2425 = vmul.f32 %v2191, %v2361
    %v2426 = vmul.f32 %v2193, %v2362
    %v2427 = vmul.f32 %v2195, %v2363
    %v2428 = vmul.f32 %v2197, %v2364
    %v2429 = vmul.f32 %v2201, %v2365
    %v2430 = vmul.f32 %v2203, %v2366
    %v2431 = vmul.f32 %v2205, %v2367
    %v2432 = vmul.f32 %v2207, %v2368
    %v2433 = vmul.f32 %v2211, %v2369
    %v2434 = vmul.f32 %v2213, %v2370
    %v2435 = vmul.f32 %v2215, %v2371
    %v2436 = vmul.f32 %v2217, %v2372
    %v2437 = vmul.f32 %v2221, %v2373
    %v2438 = vmul.f32 %v2223, %v2374
    %v2439 = vmul.f32 %v2225, %v2375
    %v2440 = vmul.f32 %v2227, %v2376
    %v2441 = vmul.f32 %v2231, %v2377
    %v2442 = vmul.f32 %v2233, %v2378
    %v2443 = vmul.f32 %v2235, %v2379
    %v2444 = vmul.f32 %v2237, %v2380
    %v2445 = vmul.f32 %v2241, %v2381
    %v2446 = vmul.f32 %v2243, %v2382
    %v2447 = vmul.f32 %v2245, %v2383
    %v2448 = vmul.f32 %v2247, %v2384
    %v2449 = vpack.c.bf16 %v2387, %v2385
    %v2450 = vpack.c.bf16 %v2388, %v2386
    %v2451 = vpack.c.bf16 %v2391, %v2389
    %v2452 = vpack.c.bf16 %v2392, %v2390
    %v2453 = vpack.c.bf16 %v2395, %v2393
    %v2454 = vpack.c.bf16 %v2396, %v2394
    %v2455 = vpack.c.bf16 %v2399, %v2397
    %v2456 = vpack.c.bf16 %v2400, %v2398
    %v2457 = vpack.c.bf16 %v2403, %v2401
    %v2458 = vpack.c.bf16 %v2404, %v2402
    %v2459 = vpack.c.bf16 %v2407, %v2405
    %v2460 = vpack.c.bf16 %v2408, %v2406
    %v2461 = vpack.c.bf16 %v2411, %v2409
    %v2462 = vpack.c.bf16 %v2412, %v2410
    %v2463 = vpack.c.bf16 %v2415, %v2413
    %v2464 = vpack.c.bf16 %v2416, %v2414
    %v2465 = vpack.c.bf16 %v2419, %v2417
    %v2466 = vpack.c.bf16 %v2420, %v2418
    %v2467 = vpack.c.bf16 %v2423, %v2421
    %v2468 = vpack.c.bf16 %v2424, %v2422
    %v2469 = vpack.c.bf16 %v2427, %v2425
    %v2470 = vpack.c.bf16 %v2428, %v2426
    %v2471 = vpack.c.bf16 %v2431, %v2429
    %v2472 = vpack.c.bf16 %v2432, %v2430
    %v2473 = vpack.c.bf16 %v2435, %v2433
    %v2474 = vpack.c.bf16 %v2436, %v2434
    %v2475 = vpack.c.bf16 %v2439, %v2437
    %v2476 = vpack.c.bf16 %v2440, %v2438
    %v2477 = vpack.c.bf16 %v2443, %v2441
    %v2478 = vpack.c.bf16 %v2444, %v2442
    %v2479 = vpack.c.bf16 %v2447, %v2445
    %v2480 = vpack.c.bf16 %v2448, %v2446
    %v2481 = vpack.c.bf16 %v1569, %v1567
    %v2482 = vpack.c.bf16 %v1570, %v1568
    %v2483 = vpack.c.bf16 %v1573, %v1571
    %v2484 = vpack.c.bf16 %v1574, %v1572
    %v2485 = vpack.c.bf16 %v1577, %v1575
    %v2486 = vpack.c.bf16 %v1578, %v1576
    %v2487 = vpack.c.bf16 %v1581, %v1579
    %v2488 = vpack.c.bf16 %v1582, %v1580
    %v2489 = vpack.c.bf16 %v1585, %v1583
    %v2490 = vpack.c.bf16 %v1586, %v1584
    %v2491 = vpack.c.bf16 %v1589, %v1587
    %v2492 = vpack.c.bf16 %v1590, %v1588
    %v2493 = vpack.c.bf16 %v1593, %v1591
    %v2494 = vpack.c.bf16 %v1594, %v1592
    %v2495 = vpack.c.bf16 %v1597, %v1595
    %v2496 = vpack.c.bf16 %v1598, %v1596
    %v2497 = vpack.c.bf16 %v1601, %v1599
    %v2498 = vpack.c.bf16 %v1602, %v1600
    %v2499 = vpack.c.bf16 %v1605, %v1603
    %v2500 = vpack.c.bf16 %v1606, %v1604
    %v2501 = vpack.c.bf16 %v1609, %v1607
    %v2502 = vpack.c.bf16 %v1610, %v1608
    %v2503 = vpack.c.bf16 %v1613, %v1611
    %v2504 = vpack.c.bf16 %v1614, %v1612
    %v2505 = vpack.c.bf16 %v1617, %v1615
    %v2506 = vpack.c.bf16 %v1618, %v1616
    %v2507 = vpack.c.bf16 %v1621, %v1619
    %v2508 = vpack.c.bf16 %v1622, %v1620
    %v2509 = vpack.c.bf16 %v1625, %v1623
    %v2510 = vpack.c.bf16 %v1626, %v1624
    %v2511 = vpack.c.bf16 %v1629, %v1627
    %v2512 = vpack.c.bf16 %v1630, %v1628
    %2513 = vmatprep.subr.bf16.mxu0 %v2482
    %2514 = vmatpush1.bf16.msra.mxu0 %v2481
    %2515 = vmatprep.subr.bf16.mxu0 %v2484
    %2516 = vmatpush1.bf16.msra.mxu0 %v2483
    %2517 = vmatprep.subr.bf16.mxu0 %v2486
    %2518 = vmatpush1.bf16.msra.mxu0 %v2485
    %2519 = vmatprep.subr.bf16.mxu0 %v2488
    %2520 = vmatpush1.bf16.msra.mxu0 %v2487
    %2521 = vmatprep.subr.bf16.mxu0 %v2490
    %2522 = vmatpush1.bf16.msra.mxu0 %v2489
    %2523 = vmatprep.subr.bf16.mxu0 %v2492
    %2524 = vmatpush1.bf16.msra.mxu0 %v2491
    %2525 = vmatprep.subr.bf16.mxu0 %v2494
    %2526 = vmatpush1.bf16.msra.mxu0 %v2493
    %2527 = vmatprep.subr.bf16.mxu0 %v2496
    %2528 = vmatpush1.bf16.msra.mxu0 %v2495
    %2529 = vmatprep.subr.bf16.mxu0 %v2498
    %2530 = vmatpush1.bf16.msra.mxu0 %v2497
    %2531 = vmatprep.subr.bf16.mxu0 %v2500
    %2532 = vmatpush1.bf16.msra.mxu0 %v2499
    %2533 = vmatprep.subr.bf16.mxu0 %v2502
    %2534 = vmatpush1.bf16.msra.mxu0 %v2501
    %2535 = vmatprep.subr.bf16.mxu0 %v2504
    %2536 = vmatpush1.bf16.msra.mxu0 %v2503
    %2537 = vmatprep.subr.bf16.mxu0 %v2506
    %2538 = vmatpush1.bf16.msra.mxu0 %v2505
    %2539 = vmatprep.subr.bf16.mxu0 %v2508
    %2540 = vmatpush1.bf16.msra.mxu0 %v2507
    %2541 = vmatprep.subr.bf16.mxu0 %v2510
    %2542 = vmatpush1.bf16.msra.mxu0 %v2509
    %2543 = vmatprep.subr.bf16.mxu0 %v2512
    %2544 = vmatpush1.bf16.msra.mxu0 %v2511
    %2545 = vmatprep.mubr.bf16.mxu0 %v2450
    %2546 = vmatmul.mubr.bf16.gmra.mrb[0].mxu0 %v2449
    %v2547 = vpop.f32.mrb[0].mxu0
    %v2548 = vadd.f32 0.0, %v2547
    %v2549 = vpop.f32.mrb[0].mxu0
    %v2550 = vadd.f32 0.0, %v2549
    %v2551 = vpop.f32.mrb[0].mxu0
    %v2552 = vadd.f32 0.0, %v2551
    %v2553 = vpop.f32.mrb[0].mxu0
    %v2554 = vadd.f32 0.0, %v2553
    %2555 = vmatprep.mubr.bf16.mxu0 %v2452
    %2556 = vmatmul.mubr.bf16.gmra.mrb[0].mxu0 %v2451
    %v2557 = vpop.f32.mrb[0].mxu0
    %v2558 = vadd.f32 0.0, %v2557
    %v2559 = vpop.f32.mrb[0].mxu0
    %v2560 = vadd.f32 0.0, %v2559
    %v2561 = vpop.f32.mrb[0].mxu0
    %v2562 = vadd.f32 0.0, %v2561
    %v2563 = vpop.f32.mrb[0].mxu0
    %v2564 = vadd.f32 0.0, %v2563
    %2565 = vmatprep.mubr.bf16.mxu0 %v2454
    %2566 = vmatmul.mubr.bf16.gmra.mrb[0].mxu0 %v2453
    %v2567 = vpop.f32.mrb[0].mxu0
    %v2568 = vadd.f32 0.0, %v2567
    %v2569 = vpop.f32.mrb[0].mxu0
    %v2570 = vadd.f32 0.0, %v2569
    %v2571 = vpop.f32.mrb[0].mxu0
    %v2572 = vadd.f32 0.0, %v2571
    %v2573 = vpop.f32.mrb[0].mxu0
    %v2574 = vadd.f32 0.0, %v2573
    %2575 = vmatprep.mubr.bf16.mxu0 %v2456
    %2576 = vmatmul.mubr.bf16.gmra.mrb[0].mxu0 %v2455
    %v2577 = vpop.f32.mrb[0].mxu0
    %v2578 = vadd.f32 0.0, %v2577
    %v2579 = vpop.f32.mrb[0].mxu0
    %v2580 = vadd.f32 0.0, %v2579
    %v2581 = vpop.f32.mrb[0].mxu0
    %v2582 = vadd.f32 0.0, %v2581
    %v2583 = vpop.f32.mrb[0].mxu0
    %v2584 = vadd.f32 0.0, %v2583
    %2585 = vmatprep.mubr.bf16.mxu0 %v2458
    %2586 = vmatmul.mubr.bf16.gmra.mrb[0].mxu0 %v2457
    %v2587 = vpop.f32.mrb[0].mxu0
    %v2588 = vadd.f32 0.0, %v2587
    %v2589 = vpop.f32.mrb[0].mxu0
    %v2590 = vadd.f32 0.0, %v2589
    %v2591 = vpop.f32.mrb[0].mxu0
    %v2592 = vadd.f32 0.0, %v2591
    %v2593 = vpop.f32.mrb[0].mxu0
    %v2594 = vadd.f32 0.0, %v2593
    %2595 = vmatprep.mubr.bf16.mxu0 %v2460
    %2596 = vmatmul.mubr.bf16.gmra.mrb[0].mxu0 %v2459
    %v2597 = vpop.f32.mrb[0].mxu0
    %v2598 = vadd.f32 0.0, %v2597
    %v2599 = vpop.f32.mrb[0].mxu0
    %v2600 = vadd.f32 0.0, %v2599
    %v2601 = vpop.f32.mrb[0].mxu0
    %v2602 = vadd.f32 0.0, %v2601
    %v2603 = vpop.f32.mrb[0].mxu0
    %v2604 = vadd.f32 0.0, %v2603
    %2605 = vmatprep.mubr.bf16.mxu0 %v2462
    %2606 = vmatmul.mubr.bf16.gmra.mrb[0].mxu0 %v2461
    %v2607 = vpop.f32.mrb[0].mxu0
    %v2608 = vadd.f32 0.0, %v2607
    %v2609 = vpop.f32.mrb[0].mxu0
    %v2610 = vadd.f32 0.0, %v2609
    %v2611 = vpop.f32.mrb[0].mxu0
    %v2612 = vadd.f32 0.0, %v2611
    %v2613 = vpop.f32.mrb[0].mxu0
    %v2614 = vadd.f32 0.0, %v2613
    %2615 = vmatprep.mubr.bf16.mxu0 %v2464
    %2616 = vmatmul.mubr.bf16.gmra.mrb[0].mxu0 %v2463
    %v2617 = vpop.f32.mrb[0].mxu0
    %v2618 = vadd.f32 0.0, %v2617
    %v2619 = vpop.f32.mrb[0].mxu0
    %v2620 = vadd.f32 0.0, %v2619
    %v2621 = vpop.f32.mrb[0].mxu0
    %v2622 = vadd.f32 0.0, %v2621
    %v2623 = vpop.f32.mrb[0].mxu0
    %v2624 = vadd.f32 0.0, %v2623
    %2625 = vmatprep.mubr.bf16.mxu0 %v2466
    %2626 = vmatmul.mubr.bf16.gmra.mrb[0].mxu0 %v2465
    %v2627 = vpop.f32.mrb[0].mxu0
    %v2628 = vadd.f32 0.0, %v2627
    %v2629 = vpop.f32.mrb[0].mxu0
    %v2630 = vadd.f32 0.0, %v2629
    %v2631 = vpop.f32.mrb[0].mxu0
    %v2632 = vadd.f32 0.0, %v2631
    %v2633 = vpop.f32.mrb[0].mxu0
    %v2634 = vadd.f32 0.0, %v2633
    %2635 = vmatprep.mubr.bf16.mxu0 %v2468
    %2636 = vmatmul.mubr.bf16.gmra.mrb[0].mxu0 %v2467
    %v2637 = vpop.f32.mrb[0].mxu0
    %v2638 = vadd.f32 0.0, %v2637
    %v2639 = vpop.f32.mrb[0].mxu0
    %v2640 = vadd.f32 0.0, %v2639
    %v2641 = vpop.f32.mrb[0].mxu0
    %v2642 = vadd.f32 0.0, %v2641
    %v2643 = vpop.f32.mrb[0].mxu0
    %v2644 = vadd.f32 0.0, %v2643
    %2645 = vmatprep.mubr.bf16.mxu0 %v2470
    %2646 = vmatmul.mubr.bf16.gmra.mrb[0].mxu0 %v2469
    %v2647 = vpop.f32.mrb[0].mxu0
    %v2648 = vadd.f32 0.0, %v2647
    %v2649 = vpop.f32.mrb[0].mxu0
    %v2650 = vadd.f32 0.0, %v2649
    %v2651 = vpop.f32.mrb[0].mxu0
    %v2652 = vadd.f32 0.0, %v2651
    %v2653 = vpop.f32.mrb[0].mxu0
    %v2654 = vadd.f32 0.0, %v2653
    %2655 = vmatprep.mubr.bf16.mxu0 %v2472
    %2656 = vmatmul.mubr.bf16.gmra.mrb[0].mxu0 %v2471
    %v2657 = vpop.f32.mrb[0].mxu0
    %v2658 = vadd.f32 0.0, %v2657
    %v2659 = vpop.f32.mrb[0].mxu0
    %v2660 = vadd.f32 0.0, %v2659
    %v2661 = vpop.f32.mrb[0].mxu0
    %v2662 = vadd.f32 0.0, %v2661
    %v2663 = vpop.f32.mrb[0].mxu0
    %v2664 = vadd.f32 0.0, %v2663
    %2665 = vmatprep.mubr.bf16.mxu0 %v2474
    %2666 = vmatmul.mubr.bf16.gmra.mrb[0].mxu0 %v2473
    %v2667 = vpop.f32.mrb[0].mxu0
    %v2668 = vadd.f32 0.0, %v2667
    %v2669 = vpop.f32.mrb[0].mxu0
    %v2670 = vadd.f32 0.0, %v2669
    %v2671 = vpop.f32.mrb[0].mxu0
    %v2672 = vadd.f32 0.0, %v2671
    %v2673 = vpop.f32.mrb[0].mxu0
    %v2674 = vadd.f32 0.0, %v2673
    %2675 = vmatprep.mubr.bf16.mxu0 %v2476
    %2676 = vmatmul.mubr.bf16.gmra.mrb[0].mxu0 %v2475
    %v2677 = vpop.f32.mrb[0].mxu0
    %v2678 = vadd.f32 0.0, %v2677
    %v2679 = vpop.f32.mrb[0].mxu0
    %v2680 = vadd.f32 0.0, %v2679
    %v2681 = vpop.f32.mrb[0].mxu0
    %v2682 = vadd.f32 0.0, %v2681
    %v2683 = vpop.f32.mrb[0].mxu0
    %v2684 = vadd.f32 0.0, %v2683
    %2685 = vmatprep.mubr.bf16.mxu0 %v2478
    %2686 = vmatmul.mubr.bf16.gmra.mrb[0].mxu0 %v2477
    %v2687 = vpop.f32.mrb[0].mxu0
    %v2688 = vadd.f32 0.0, %v2687
    %v2689 = vpop.f32.mrb[0].mxu0
    %v2690 = vadd.f32 0.0, %v2689
    %v2691 = vpop.f32.mrb[0].mxu0
    %v2692 = vadd.f32 0.0, %v2691
    %v2693 = vpop.f32.mrb[0].mxu0
    %v2694 = vadd.f32 0.0, %v2693
    %2695 = vmatprep.mubr.bf16.mxu0 %v2480
    %2696 = vmatmul.mubr.bf16.gmra.mrb[0].mxu0 %v2479
    %v2697 = vpop.f32.mrb[0].mxu0
    %v2698 = vadd.f32 0.0, %v2697
    %v2699 = vpop.f32.mrb[0].mxu0
    %v2700 = vadd.f32 0.0, %v2699
    %v2701 = vpop.f32.mrb[0].mxu0
    %v2702 = vadd.f32 0.0, %v2701
    %v2703 = vpop.f32.mrb[0].mxu0
    %v2704 = vadd.f32 0.0, %v2703
    %2705 = vdwg.mxu0
    %v2706 = vld [vmem:[%s2] sm:$0xff]
    %v2707 = vld [vmem:[%s2 + $0x8] sm:$0xff]
    %v2708 = vld [vmem:[%s3] sm:$0xff]
    %2710 = vset.pattern.permute.xlu0 0
    %2711 = vperm.xlu0 %2710, %v2708
    %v2712 = vpop.permute.xlu0 %2711
    %2714 = vmatprep.subr.mxu0 %v2550
    %2715 = vmatpush1.msra.mxu0 %v2548
    %2716 = vmatprep.subr.mxu0 %v2554
    %2717 = vmatpush1.msra.mxu0 %v2552
    %2718 = vmatprep.subr.mxu0 %v2560
    %2719 = vmatpush1.msra.mxu0 %v2558
    %2720 = vmatprep.subr.mxu0 %v2564
    %2721 = vmatpush1.msra.mxu0 %v2562
    %2722 = vmatprep.subr.mxu0 %v2570
    %2723 = vmatpush1.msra.mxu0 %v2568
    %2724 = vmatprep.subr.mxu0 %v2574
    %2725 = vmatpush1.msra.mxu0 %v2572
    %2726 = vmatprep.subr.mxu0 %v2580
    %2727 = vmatpush1.msra.mxu0 %v2578
    %2728 = vmatprep.subr.mxu0 %v2584
    %2729 = vmatpush1.msra.mxu0 %v2582
    %2730 = vmatprep.subr.mxu0 %v2590
    %2731 = vmatpush1.msra.mxu0 %v2588
    %2732 = vmatprep.subr.mxu0 %v2594
    %2733 = vmatpush1.msra.mxu0 %v2592
    %2734 = vmatprep.subr.mxu0 %v2600
    %2735 = vmatpush1.msra.mxu0 %v2598
    %2736 = vmatprep.subr.mxu0 %v2604
    %2737 = vmatpush1.msra.mxu0 %v2602
    %2738 = vmatprep.subr.mxu0 %v2610
    %2739 = vmatpush1.msra.mxu0 %v2608
    %2740 = vmatprep.subr.mxu0 %v2614
    %2741 = vmatpush1.msra.mxu0 %v2612
    %2742 = vmatprep.subr.mxu0 %v2620
    %2743 = vmatpush1.msra.mxu0 %v2618
    %2744 = vmatprep.subr.mxu0 %v2624
    %2745 = vmatpush1.msra.mxu0 %v2622
    %2746 = vmatprep.subr.mxu0 %v2630
    %2747 = vmatpush1.msra.mxu0 %v2628
    %2748 = vmatprep.subr.mxu0 %v2634
    %2749 = vmatpush1.msra.mxu0 %v2632
    %2750 = vmatprep.subr.mxu0 %v2640
    %2751 = vmatpush1.msra.mxu0 %v2638
    %2752 = vmatprep.subr.mxu0 %v2644
    %2753 = vmatpush1.msra.mxu0 %v2642
    %2754 = vmatprep.subr.mxu0 %v2650
    %2755 = vmatpush1.msra.mxu0 %v2648
    %2756 = vmatprep.subr.mxu0 %v2654
    %2757 = vmatpush1.msra.mxu0 %v2652
    %2758 = vmatprep.subr.mxu0 %v2660
    %2759 = vmatpush1.msra.mxu0 %v2658
    %2760 = vmatprep.subr.mxu0 %v2664
    %2761 = vmatpush1.msra.mxu0 %v2662
    %2762 = vmatprep.subr.mxu0 %v2670
    %2763 = vmatpush1.msra.mxu0 %v2668
    %2764 = vmatprep.subr.mxu0 %v2674
    %2765 = vmatpush1.msra.mxu0 %v2672
    %2766 = vmatprep.subr.mxu0 %v2680
    %2767 = vmatpush1.msra.mxu0 %v2678
    %2768 = vmatprep.subr.mxu0 %v2684
    %2769 = vmatpush1.msra.mxu0 %v2682
    %2770 = vmatprep.subr.mxu0 %v2690
    %2771 = vmatpush1.msra.mxu0 %v2688
    %2772 = vmatprep.subr.mxu0 %v2694
    %2773 = vmatpush1.msra.mxu0 %v2692
    %2774 = vmatprep.subr.mxu0 %v2700
    %2775 = vmatpush1.msra.mxu0 %v2698
    %2776 = vmatprep.subr.mxu0 %v2704
    %2777 = vmatpush1.msra.mxu0 %v2702
    %2778 = vmatprep.mubr.f32.mxu0 %v2707
    %2779 = vmatmul.mubr.f32.gmra.mrb[0].mxu0 %v2706
    %v2780 = vpop.f32.mrb[0].mxu0
    %v2781 = vadd.f32 %v2712, %v2780
    %v2782 = vpop.f32.mrb[0].mxu0
    %v2783 = vadd.f32 %v2712, %v2782
    %2784 = vdwg.mxu0
    %vm2785 = vcmask 1043456
    %v2786 = vsel %vm2785, %v2781, 0.0
    %v2787 = vsel %vm2785, %v2783, 0.0
    %v2788 = vadd.f32 %v2786, %v2787
    %2789 = vadd.xlane.f32.xlu0 %v2788
    %v2790 = vpop.xlane.xlu0 %2789
    %v2791 = vrot.slane %v2790, 4
    %v2792 = vadd.f32 %v2790, %v2791
    %v2793 = vrot.slane %v2792, 2
    %v2794 = vadd.f32 %v2792, %v2793
    %v2795 = vrot.slane %v2794, 1
    %v2796 = vadd.f32 %v2794, %v2795
    %s2797 = vtos %v2796
    %s2798 = smul.f32 %s2797, 0.0009765625
    %v2799 = vstv %s2798
    %v2800 = vsub.f32 %v2781, %v2799
    %v2801 = vsub.f32 %v2783, %v2799
    %v2802 = vmul.f32 %v2800, %v2800
    %v2803 = vmul.f32 %v2801, %v2801
    %v2804 = vsel %vm2785, %v2802, 0.0
    %v2805 = vsel %vm2785, %v2803, 0.0
    %v2806 = vadd.f32 %v2804, %v2805
    %2807 = vadd.xlane.f32.xlu0 %v2806
    %v2808 = vpop.xlane.xlu0 %2807
    %v2809 = vrot.slane %v2808, 4
    %v2810 = vadd.f32 %v2808, %v2809
    %v2811 = vrot.slane %v2810, 2
    %v2812 = vadd.f32 %v2810, %v2811
    %v2813 = vrot.slane %v2812, 1
    %v2814 = vadd.f32 %v2812, %v2813
    %s2815 = vtos %v2814
    %s2816 = smul.f32 %s2815, 0.0009765625
    %v2817 = vld [vmem:[%s4] sm:$0xf]
    %s2818 = sadd.f32 %s2816, 1e-05
    %v2819 = vstv %s2818
    %v2820 = vrsqrt.pop %v2819
    %s2821 = vtos %v2820
    %v2822 = vstv %s2821
    %v2823 = vmul.f32 %v2817, %v2822
    %2825 = vset.pattern.permute.xlu0 0
    %2826 = vperm.xlu0 %2825, %v2823
    %v2827 = vpop.permute.xlu0 %2826
    %v2829 = vmul.f32 %v2800, %v2827
    %v2830 = vmul.f32 %v2801, %v2827
    %v2831 = vld [vmem:[%s5] sm:$0xf]
    %2833 = vset.pattern.permute.xlu0 0
    %2834 = vperm.xlu0 %2833, %v2831
    %v2835 = vpop.permute.xlu0 %2834
    %v2837 = vadd.f32 %v2829, %v2835
    %v2838 = vadd.f32 %v2830, %v2835
    %2839 = vst [vmem:[#allocation2] sm:$0xf] %v2837
    %2840 = vst [vmem:[#allocation2 + $0x8] sm:$0xf] %v2838
    %v2843 = vrot.slane %v2781, 4
    %v2844 = vrot.slane %v2783, 4
    %v2847 = vsel %vm2785, %v2843, 0.0
    %v2848 = vsel %vm2785, %v2844, 0.0
    %v2849 = vadd.f32 %v2847, %v2848
    %2850 = vadd.xlane.f32.xlu0 %v2849
    %v2851 = vpop.xlane.xlu0 %2850
    %v2852 = vrot.slane %v2851, 4
    %v2853 = vadd.f32 %v2851, %v2852
    %v2854 = vrot.slane %v2853, 2
    %v2855 = vadd.f32 %v2853, %v2854
    %v2856 = vrot.slane %v2855, 1
    %v2857 = vadd.f32 %v2855, %v2856
    %s2858 = vtos %v2857
    %s2859 = smul.f32 %s2858, 0.0009765625
    %v2860 = vstv %s2859
    %v2861 = vsub.f32 %v2781, %v2860
    %v2862 = vsub.f32 %v2783, %v2860
    %v2863 = vmul.f32 %v2861, %v2861
    %v2864 = vmul.f32 %v2862, %v2862
    %v2867 = vrot.slane %v2863, 4
    %v2868 = vrot.slane %v2864, 4
    %v2871 = vsel %vm2785, %v2867, 0.0
    %v2872 = vsel %vm2785, %v2868, 0.0
    %v2873 = vadd.f32 %v2871, %v2872
    %2874 = vadd.xlane.f32.xlu0 %v2873
    %v2875 = vpop.xlane.xlu0 %2874
    %v2876 = vrot.slane %v2875, 4
    %v2877 = vadd.f32 %v2875, %v2876
    %v2878 = vrot.slane %v2877, 2
    %v2879 = vadd.f32 %v2877, %v2878
    %v2880 = vrot.slane %v2879, 1
    %v2881 = vadd.f32 %v2879, %v2880
    %s2882 = vtos %v2881
    %s2883 = smul.f32 %s2882, 0.0009765625
    %v2884 = vld [vmem:[%s4] sm:$0xf]
    %s2885 = sadd.f32 %s2883, 1e-05
    %v2886 = vstv %s2885
    %v2887 = vrsqrt.pop %v2886
    %s2888 = vtos %v2887
    %v2889 = vstv %s2888
    %v2890 = vmul.f32 %v2884, %v2889
    %2892 = vset.pattern.permute.xlu0 0
    %2893 = vperm.xlu0 %2892, %v2890
    %v2894 = vpop.permute.xlu0 %2893
    %v2895 = vrot.slane %v2894, 4
    %v2897 = vmul.f32 %v2861, %v2895
    %v2898 = vmul.f32 %v2862, %v2895
    %v2899 = vld [vmem:[%s5] sm:$0xf]
    %2901 = vset.pattern.permute.xlu0 0
    %2902 = vperm.xlu0 %2901, %v2899
    %v2903 = vpop.permute.xlu0 %2902
    %v2904 = vrot.slane %v2903, 4
    %v2906 = vadd.f32 %v2897, %v2904
    %v2907 = vadd.f32 %v2898, %v2904
    %2908 = vst [vmem:[#allocation2] sm:$0xf0] %v2906
    %2909 = vst [vmem:[#allocation2 + $0x8] sm:$0xf0] %v2907
    // Predicated region
    $region30: #{tpu_custom_call.1} parent=1 // pred_check
      _
    $region31: #{tpu_custom_call.1} parent=1 // pred_check_branch
      %2911 = sbr.rel (0) target = $region33
    $region32: #{tpu_custom_call.1} parent=1 // pred_region
      %s2913 = ssub.s32 256, 256
      %2914 = vsyncadd [#allocation3], %s2913
      %s2916 = sshll.u32 [#allocation2], 4
      %s2917 = int_to_ptr.vmem [resolvable:$true] %s2916
      %2919 = dma.vmem_to_hbm [thread:$0]  %s2917, 256, %s7, [#allocation3]
    $region33: #{tpu_custom_call.1} parent=1 // pred_fallthru
      _
    // Predicated region
    $region34: #{tpu_custom_call.1} parent=1 // pred_check
      _
    $region35: #{tpu_custom_call.1} parent=1 // pred_check_branch
      %2921 = sbr.rel (0) target = $region37
    $region36: #{tpu_custom_call.1} parent=1 // pred_region
      %2922 = dma.done [#allocation3], 256
    $region37: #{tpu_custom_call.1} parent=1 // pred_fallthru
      _
    %2923 = vsyncpa [#allocation3], 1

</llo_original>
